<compile_context>
chip_gen: v7x
topology: tpu7x:2x2x1
jax: 0.10.0
libtpu: 0.0.40
codegen_flags: <defaults>
</compile_context>

<pallas_src>
import functools
import math

import jax
import jax.numpy as jnp
from jax.experimental import pallas as pl
from jax.experimental.pallas import tpu as pltpu


# ----------------------------------------------------------------------------
# Kernel: fused causal self-attention for one (Bt*T, C) row slab
# ----------------------------------------------------------------------------

def _causal_self_attention_kernel(x_ref, wqkv_ref, bqkv_ref, wp_ref, bp_ref,
                                  o_ref, *, n_head, seq_len):
    """x_ref: (Bt*T, C) bf16; wqkv_ref: (C, 3C) bf16; bqkv_ref: (1, 3C) f32;
    wp_ref: (C, C) bf16; bp_ref: (1, C) f32; o_ref: (Bt*T, C) f32."""
    rows, C = x_ref.shape
    T = seq_len
    bt = rows // T
    hd = C // n_head

    # --- Fused QKV projection: one wide bf16 MXU matmul, f32 accumulation. ---
    qkv = jnp.dot(x_ref[...], wqkv_ref[...],
                  preferred_element_type=jnp.float32) + bqkv_ref[...]
    qkv = qkv.astype(jnp.bfloat16)              # bf16 operands for the attention dots

    # Causal mask, shared across all batch elements / heads of the block.
    row_id = jax.lax.broadcasted_iota(jnp.int32, (T, T), 0)
    col_id = jax.lax.broadcasted_iota(jnp.int32, (T, T), 1)
    causal = col_id <= row_id
    neg_big = jnp.float32(-1e30)                # finite "-inf": no NaN risk if reused

    # --- Per (batch-in-block, head) causal softmax attention (softmax in f32). ---
    # bt and n_head are small for DMamba configs, so a static unroll is fine.
    # TODO(synk): for long sequences / large C, tile T with an online softmax
    # (flash-style) and hoist (b, h) onto a grid axis / fori_loop to bound live ranges.
    y_rows = []
    for b in range(bt):
        r0 = b * T
        heads = []
        for h in range(n_head):
            lo = h * hd
            qh = qkv[r0:r0 + T, lo:lo + hd]                 # scale pre-folded into Wq/bq
            kh = qkv[r0:r0 + T, C + lo:C + lo + hd]
            vh = qkv[r0:r0 + T, 2 * C + lo:2 * C + lo + hd]
            att = jax.lax.dot_general(                       # (T, T) = qh @ kh^T
                qh, kh, dimension_numbers=(((1,), (1,)), ((), ())),
                preferred_element_type=jnp.float32)
            att = jnp.where(causal, att, neg_big)            # masked_fill(mask==0, -inf)
            att = att - jnp.max(att, axis=-1, keepdims=True)
            p = jnp.exp(att)
            inv = pl.reciprocal(jnp.sum(p, axis=-1, keepdims=True), approx=True)  # EUP
            p = (p * inv).astype(jnp.bfloat16)               # attn_drop = identity (eval)
            heads.append(jnp.dot(p, vh, preferred_element_type=jnp.float32))  # (T, hd)
        y_rows.append(jnp.concatenate(heads, axis=-1))       # (T, C)
    y = jnp.concatenate(y_rows, axis=0).astype(jnp.bfloat16)  # (rows, C)

    # --- Single full-width output projection + bias; resid_drop = identity. ---
    out = jnp.dot(y, wp_ref[...], preferred_element_type=jnp.float32) + bp_ref[...]
    o_ref[...] = out.astype(o_ref.dtype)


# ----------------------------------------------------------------------------
# Wrapper helpers
# ----------------------------------------------------------------------------

def _pick_batch_tile(B, T, target_rows=256):
    """Batch tile Bt (divisor of B). Small problems go in one full-dim block;
    larger ones aim for ~target_rows per slab, 16-row alignment (bf16 sublane
    packing) and >=2 grid steps (v7x megacore)."""
    if B * T <= target_rows:
        return B
    cands = [bt for bt in range(1, B) if B % bt == 0
             and bt * T <= target_rows and (bt * T) % 16 == 0]
    if cands:
        return max(cands)
    cands = [bt for bt in range(1, B + 1) if B % bt == 0
             and (bt * T) % 8 == 0 and bt * T <= max(target_rows, T)]
    return max(cands) if cands else B


def _vmem_limit_bytes(row_tile, seq_len, C):
    io = 2 * row_tile * C * (2 + 4)                     # double-buffered x(bf16)+out(f32)
    weights = (3 * C * C + C * C) * 2 + 4 * C * 4       # single-buffered weights/biases
    work = row_tile * 3 * C * 6                          # qkv f32 + bf16 copy
    work += row_tile * C * 10                            # y (f32 + bf16) + out f32
    work += 4 * seq_len * seq_len * 4                    # live (T,T) score/prob buffers
    limit = io + weights + work + (4 << 20)              # + compiler-scratch headroom
    return int(min(max(limit, 8 << 20), 64 << 20))


def _make_attention_call(n_rows, C, n_head, seq_len, row_tile, *, weight_pipeline):
    w_kwargs = {} if weight_pipeline is None else dict(pipeline_mode=weight_pipeline)
    return pl.pallas_call(
        functools.partial(_causal_self_attention_kernel,
                          n_head=n_head, seq_len=seq_len),
        out_shape=jax.ShapeDtypeStruct((n_rows, C), jnp.float32),
        grid=(n_rows // row_tile,),
        in_specs=[
            pl.BlockSpec((row_tile, C), lambda i: (i, 0)),             # x rows (batch*seq)
            pl.BlockSpec((C, 3 * C), lambda i: (0, 0), **w_kwargs),    # Wqkv (replicated)
            pl.BlockSpec((1, 3 * C), lambda i: (0, 0), **w_kwargs),    # bqkv
            pl.BlockSpec((C, C), lambda i: (0, 0), **w_kwargs),        # Wproj
            pl.BlockSpec((1, C), lambda i: (0, 0), **w_kwargs),        # bproj
        ],
        out_specs=pl.BlockSpec((row_tile, C), lambda i: (i, 0)),
        compiler_params=pltpu.CompilerParams(
            dimension_semantics=("parallel",),                          # row slabs independent
            vmem_limit_bytes=_vmem_limit_bytes(row_tile, seq_len, C)),
    )


def pack_params(wq, bq, wk, bk, wv, bv, wp, bp, n_head):
    """Pack once at init (not per forward): fold 1/sqrt(hd) into Wq/bq, fuse
    Q/K/V weights into one (C, 3C) bf16 matrix, cast Wproj to bf16."""
    C = wq.shape[0]
    scale = 1.0 / math.sqrt(C // n_head)
    wqkv = jnp.concatenate([wq * scale, wk, wv], axis=1).astype(jnp.bfloat16)   # (C, 3C)
    bqkv = jnp.concatenate([bq * scale, bk, bv]).reshape(1, 3 * C).astype(jnp.float32)
    return wqkv, bqkv, wp.astype(jnp.bfloat16), bp.reshape(1, C).astype(jnp.float32)


def causal_self_attention(x, packed_params, n_head):
    """x: (B, T, C) float.  packed_params = pack_params(...)."""
    wqkv, bqkv, wp, bp = packed_params
    B, T, C = x.shape
    assert C % n_head == 0
    bt = _pick_batch_tile(B, T)
    x2 = x.reshape(B * T, C).astype(jnp.bfloat16)   # lane-dense 2D slab, half HBM traffic
    args = (x2, wqkv, bqkv, wp, bp)
    try:
        call = _make_attention_call(B * T, C, n_head, T, bt * T,
                                    weight_pipeline=pl.Buffered(1))
        out2 = call(*args)
    except Exception:
        # Fallback if single-buffered pipeline_mode is unsupported by this jax/libtpu.
        call = _make_attention_call(B * T, C, n_head, T, bt * T, weight_pipeline=None)
        out2 = call(*args)
    return out2.reshape(B, T, C)


# ----------------------------------------------------------------------------
# Pure-JAX reference (mirrors the PyTorch forward exactly, eval mode, f32)
# ----------------------------------------------------------------------------

def _reference(x, wq, bq, wk, bk, wv, bv, wp, bp, n_head):
    B, T, C = x.shape
    hd = C // n_head
    with jax.default_matmul_precision("highest"):
        q = (x @ wq + bq).reshape(B, T, n_head, hd).transpose(0, 2, 1, 3)
        k = (x @ wk + bk).reshape(B, T, n_head, hd).transpose(0, 2, 1, 3)
        v = (x @ wv + bv).reshape(B, T, n_head, hd).transpose(0, 2, 1, 3)
        att = jnp.einsum("bhtd,bhsd->bhts", q, k) * (1.0 / math.sqrt(hd))
        mask = jnp.tril(jnp.ones((T, T), dtype=bool))
        att = jnp.where(mask[None, None], att, -jnp.inf)
        att = jax.nn.softmax(att, axis=-1)
        y = jnp.einsum("bhts,bhsd->bhtd", att, v)
        y = y.transpose(0, 2, 1, 3).reshape(B, T, C)
        return y @ wp + bp


# ----------------------------------------------------------------------------

if __name__ == "__main__":
    class Config:
        n_embd = 32
        n_head = 4
        block_size = 8
        attn_pdrop = 0.1   # eval mode -> identity
        resid_pdrop = 0.1  # eval mode -> identity

    cfg = Config()
    B, T, C = 2, cfg.block_size, cfg.n_embd

    key = jax.random.PRNGKey(0)
    kx, kq, kk, kv, kp, kbq, kbk, kbv, kbp = jax.random.split(key, 9)
    x = jax.random.normal(kx, (B, T, C), jnp.float32)
    # (in, out) layout == transposed torch nn.Linear weight.
    wq = 0.02 * jax.random.normal(kq, (C, C), jnp.float32)
    wk = 0.02 * jax.random.normal(kk, (C, C), jnp.float32)
    wv = 0.02 * jax.random.normal(kv, (C, C), jnp.float32)
    wp = 0.02 * jax.random.normal(kp, (C, C), jnp.float32)
    bq = 0.01 * jax.random.normal(kbq, (C,), jnp.float32)
    bk = 0.01 * jax.random.normal(kbk, (C,), jnp.float32)
    bv = 0.01 * jax.random.normal(kbv, (C,), jnp.float32)
    bp = 0.01 * jax.random.normal(kbp, (C,), jnp.float32)

    packed = pack_params(wq, bq, wk, bk, wv, bv, wp, bp, cfg.n_head)
    out = jax.block_until_ready(causal_self_attention(x, packed, cfg.n_head))

    ref = jax.block_until_ready(
        _reference(x, wq, bq, wk, bk, wv, bv, wp, bp, cfg.n_head))

    assert out.shape == (B, T, C), out.shape
    assert bool(jnp.all(jnp.isfinite(out)))
    # bf16 MXU operands -> relaxed tolerance vs. the f32 "highest" reference.
    assert bool(jnp.allclose(out, ref, atol=3e-3, rtol=3e-2)), (
        float(jnp.max(jnp.abs(out - ref))))
    print("KERNEL_OK")
</pallas_src>

<mosaic_0001>
module attributes {stable_mosaic.version = 11 : i64} {
  func.func @_causal_self_attention_kernel(%arg0: i32, %arg1: memref<16x32xbf16, #tpu.memory_space<vmem>>, %arg2: memref<32x96xbf16, #tpu.memory_space<vmem>>, %arg3: memref<1x96xf32, #tpu.memory_space<vmem>>, %arg4: memref<32x32xbf16, #tpu.memory_space<vmem>>, %arg5: memref<1x32xf32, #tpu.memory_space<vmem>>, %arg6: memref<16x32xf32, #tpu.memory_space<vmem>>) attributes {dimension_semantics = [#tpu.dimension_semantics<parallel>], iteration_bounds = array<i64: 1>, scalar_prefetch = 0 : i64, scratch_operands = 0 : i64, tpu.core_type = #tpu.core_type<tc>, window_params = [{transform_indices = @transform_0, window_bounds = array<i64: 16, 32>}, {pipeline_mode = #tpu.pipeline_mode<synchronous>, transform_indices = @transform_1, window_bounds = array<i64: 32, 96>}, {pipeline_mode = #tpu.pipeline_mode<synchronous>, transform_indices = @transform_2, window_bounds = array<i64: 1, 96>}, {pipeline_mode = #tpu.pipeline_mode<synchronous>, transform_indices = @transform_3, window_bounds = array<i64: 32, 32>}, {pipeline_mode = #tpu.pipeline_mode<synchronous>, transform_indices = @transform_4, window_bounds = array<i64: 1, 32>}, {transform_indices = @transform_5, window_bounds = array<i64: 16, 32>}]} {
    %c0 = arith.constant 0 : index
    %c0_0 = arith.constant 0 : index
    %0 = vector.load %arg1[%c0, %c0_0] : memref<16x32xbf16, #tpu.memory_space<vmem>>, vector<16x32xbf16>
    %c0_1 = arith.constant 0 : index
    %c0_2 = arith.constant 0 : index
    %1 = vector.load %arg2[%c0_1, %c0_2] : memref<32x96xbf16, #tpu.memory_space<vmem>>, vector<32x96xbf16>
    %cst = arith.constant dense<0.000000e+00> : vector<16x96xf32>
    %2 = tpu.matmul %0, %1, %cst {dimension_numbers = #tpu.dot_dimension_numbers<[1], [0], [0], [1], [0, 0, 1, 1], [], []>} : vector<16x32xbf16>, vector<32x96xbf16>, vector<16x96xf32> -> vector<16x96xf32>
    %c0_3 = arith.constant 0 : index
    %c0_4 = arith.constant 0 : index
    %3 = vector.load %arg3[%c0_3, %c0_4] : memref<1x96xf32, #tpu.memory_space<vmem>>, vector<1x96xf32>
    %4 = vector.broadcast %3 : vector<1x96xf32> to vector<16x96xf32>
    %5 = arith.addf %2, %4 : vector<16x96xf32>
    %6 = arith.truncf %5 : vector<16x96xf32> to vector<16x96xbf16>
    %7 = tpu.iota {dimensions = array<i32: 0>} : vector<8x8xi32>
    %8 = tpu.iota {dimensions = array<i32: 1>} : vector<8x8xi32>
    %9 = arith.cmpi sle, %8, %7 : vector<8x8xi32>
    %10 = vector.extract_strided_slice %6 {offsets = [0, 0], sizes = [8, 8], strides = [1, 1]} : vector<16x96xbf16> to vector<8x8xbf16>
    %11 = vector.extract_strided_slice %6 {offsets = [0, 32], sizes = [8, 8], strides = [1, 1]} : vector<16x96xbf16> to vector<8x8xbf16>
    %12 = vector.extract_strided_slice %6 {offsets = [0, 64], sizes = [8, 8], strides = [1, 1]} : vector<16x96xbf16> to vector<8x8xbf16>
    %cst_5 = arith.constant dense<0.000000e+00> : vector<8x8xf32>
    %13 = tpu.matmul %10, %11, %cst_5 {dimension_numbers = #tpu.dot_dimension_numbers<[1], [1], [0], [0], [0, 0, 1, 0], [], []>} : vector<8x8xbf16>, vector<8x8xbf16>, vector<8x8xf32> -> vector<8x8xf32>
    %cst_6 = arith.constant -1.000000e+30 : f32
    %14 = vector.broadcast %cst_6 : f32 to vector<8x8xf32>
    %15 = arith.select %9, %13, %14 : vector<8x8xi1>, vector<8x8xf32>
    %cst_7 = arith.constant dense<0xFF800000> : vector<8xf32>
    %16 = vector.multi_reduction <maximumf>, %15, %cst_7 [1] : vector<8x8xf32> to vector<8xf32>
    %17 = vector.shape_cast %16 : vector<8xf32> to vector<8x1xf32>
    %18 = vector.broadcast %17 : vector<8x1xf32> to vector<8x8xf32>
    %19 = arith.subf %15, %18 : vector<8x8xf32>
    %20 = math.exp %19 : vector<8x8xf32>
    %cst_8 = arith.constant dense<0.000000e+00> : vector<8xf32>
    %21 = vector.multi_reduction <add>, %20, %cst_8 [1] : vector<8x8xf32> to vector<8xf32>
    %22 = vector.shape_cast %21 : vector<8xf32> to vector<8x1xf32>
    %23 = tpu.reciprocal %22 {approx = true} : vector<8x1xf32> -> vector<8x1xf32>
    %24 = vector.broadcast %23 : vector<8x1xf32> to vector<8x8xf32>
    %25 = arith.mulf %20, %24 : vector<8x8xf32>
    %26 = arith.truncf %25 : vector<8x8xf32> to vector<8x8xbf16>
    %cst_9 = arith.constant dense<0.000000e+00> : vector<8x8xf32>
    %27 = tpu.matmul %26, %12, %cst_9 {dimension_numbers = #tpu.dot_dimension_numbers<[1], [0], [0], [1], [0, 0, 1, 1], [], []>} : vector<8x8xbf16>, vector<8x8xbf16>, vector<8x8xf32> -> vector<8x8xf32>
    %28 = vector.extract_strided_slice %6 {offsets = [0, 8], sizes = [8, 8], strides = [1, 1]} : vector<16x96xbf16> to vector<8x8xbf16>
    %29 = vector.extract_strided_slice %6 {offsets = [0, 40], sizes = [8, 8], strides = [1, 1]} : vector<16x96xbf16> to vector<8x8xbf16>
    %30 = vector.extract_strided_slice %6 {offsets = [0, 72], sizes = [8, 8], strides = [1, 1]} : vector<16x96xbf16> to vector<8x8xbf16>
    %cst_10 = arith.constant dense<0.000000e+00> : vector<8x8xf32>
    %31 = tpu.matmul %28, %29, %cst_10 {dimension_numbers = #tpu.dot_dimension_numbers<[1], [1], [0], [0], [0, 0, 1, 0], [], []>} : vector<8x8xbf16>, vector<8x8xbf16>, vector<8x8xf32> -> vector<8x8xf32>
    %cst_11 = arith.constant -1.000000e+30 : f32
    %32 = vector.broadcast %cst_11 : f32 to vector<8x8xf32>
    %33 = arith.select %9, %31, %32 : vector<8x8xi1>, vector<8x8xf32>
    %cst_12 = arith.constant dense<0xFF800000> : vector<8xf32>
    %34 = vector.multi_reduction <maximumf>, %33, %cst_12 [1] : vector<8x8xf32> to vector<8xf32>
    %35 = vector.shape_cast %34 : vector<8xf32> to vector<8x1xf32>
    %36 = vector.broadcast %35 : vector<8x1xf32> to vector<8x8xf32>
    %37 = arith.subf %33, %36 : vector<8x8xf32>
    %38 = math.exp %37 : vector<8x8xf32>
    %cst_13 = arith.constant dense<0.000000e+00> : vector<8xf32>
    %39 = vector.multi_reduction <add>, %38, %cst_13 [1] : vector<8x8xf32> to vector<8xf32>
    %40 = vector.shape_cast %39 : vector<8xf32> to vector<8x1xf32>
    %41 = tpu.reciprocal %40 {approx = true} : vector<8x1xf32> -> vector<8x1xf32>
    %42 = vector.broadcast %41 : vector<8x1xf32> to vector<8x8xf32>
    %43 = arith.mulf %38, %42 : vector<8x8xf32>
    %44 = arith.truncf %43 : vector<8x8xf32> to vector<8x8xbf16>
    %cst_14 = arith.constant dense<0.000000e+00> : vector<8x8xf32>
    %45 = tpu.matmul %44, %30, %cst_14 {dimension_numbers = #tpu.dot_dimension_numbers<[1], [0], [0], [1], [0, 0, 1, 1], [], []>} : vector<8x8xbf16>, vector<8x8xbf16>, vector<8x8xf32> -> vector<8x8xf32>
    %46 = vector.extract_strided_slice %6 {offsets = [0, 16], sizes = [8, 8], strides = [1, 1]} : vector<16x96xbf16> to vector<8x8xbf16>
    %47 = vector.extract_strided_slice %6 {offsets = [0, 48], sizes = [8, 8], strides = [1, 1]} : vector<16x96xbf16> to vector<8x8xbf16>
    %48 = vector.extract_strided_slice %6 {offsets = [0, 80], sizes = [8, 8], strides = [1, 1]} : vector<16x96xbf16> to vector<8x8xbf16>
    %cst_15 = arith.constant dense<0.000000e+00> : vector<8x8xf32>
    %49 = tpu.matmul %46, %47, %cst_15 {dimension_numbers = #tpu.dot_dimension_numbers<[1], [1], [0], [0], [0, 0, 1, 0], [], []>} : vector<8x8xbf16>, vector<8x8xbf16>, vector<8x8xf32> -> vector<8x8xf32>
    %cst_16 = arith.constant -1.000000e+30 : f32
    %50 = vector.broadcast %cst_16 : f32 to vector<8x8xf32>
    %51 = arith.select %9, %49, %50 : vector<8x8xi1>, vector<8x8xf32>
    %cst_17 = arith.constant dense<0xFF800000> : vector<8xf32>
    %52 = vector.multi_reduction <maximumf>, %51, %cst_17 [1] : vector<8x8xf32> to vector<8xf32>
    %53 = vector.shape_cast %52 : vector<8xf32> to vector<8x1xf32>
    %54 = vector.broadcast %53 : vector<8x1xf32> to vector<8x8xf32>
    %55 = arith.subf %51, %54 : vector<8x8xf32>
    %56 = math.exp %55 : vector<8x8xf32>
    %cst_18 = arith.constant dense<0.000000e+00> : vector<8xf32>
    %57 = vector.multi_reduction <add>, %56, %cst_18 [1] : vector<8x8xf32> to vector<8xf32>
    %58 = vector.shape_cast %57 : vector<8xf32> to vector<8x1xf32>
    %59 = tpu.reciprocal %58 {approx = true} : vector<8x1xf32> -> vector<8x1xf32>
    %60 = vector.broadcast %59 : vector<8x1xf32> to vector<8x8xf32>
    %61 = arith.mulf %56, %60 : vector<8x8xf32>
    %62 = arith.truncf %61 : vector<8x8xf32> to vector<8x8xbf16>
    %cst_19 = arith.constant dense<0.000000e+00> : vector<8x8xf32>
    %63 = tpu.matmul %62, %48, %cst_19 {dimension_numbers = #tpu.dot_dimension_numbers<[1], [0], [0], [1], [0, 0, 1, 1], [], []>} : vector<8x8xbf16>, vector<8x8xbf16>, vector<8x8xf32> -> vector<8x8xf32>
    %64 = vector.extract_strided_slice %6 {offsets = [0, 24], sizes = [8, 8], strides = [1, 1]} : vector<16x96xbf16> to vector<8x8xbf16>
    %65 = vector.extract_strided_slice %6 {offsets = [0, 56], sizes = [8, 8], strides = [1, 1]} : vector<16x96xbf16> to vector<8x8xbf16>
    %66 = vector.extract_strided_slice %6 {offsets = [0, 88], sizes = [8, 8], strides = [1, 1]} : vector<16x96xbf16> to vector<8x8xbf16>
    %cst_20 = arith.constant dense<0.000000e+00> : vector<8x8xf32>
    %67 = tpu.matmul %64, %65, %cst_20 {dimension_numbers = #tpu.dot_dimension_numbers<[1], [1], [0], [0], [0, 0, 1, 0], [], []>} : vector<8x8xbf16>, vector<8x8xbf16>, vector<8x8xf32> -> vector<8x8xf32>
    %cst_21 = arith.constant -1.000000e+30 : f32
    %68 = vector.broadcast %cst_21 : f32 to vector<8x8xf32>
    %69 = arith.select %9, %67, %68 : vector<8x8xi1>, vector<8x8xf32>
    %cst_22 = arith.constant dense<0xFF800000> : vector<8xf32>
    %70 = vector.multi_reduction <maximumf>, %69, %cst_22 [1] : vector<8x8xf32> to vector<8xf32>
    %71 = vector.shape_cast %70 : vector<8xf32> to vector<8x1xf32>
    %72 = vector.broadcast %71 : vector<8x1xf32> to vector<8x8xf32>
    %73 = arith.subf %69, %72 : vector<8x8xf32>
    %74 = math.exp %73 : vector<8x8xf32>
    %cst_23 = arith.constant dense<0.000000e+00> : vector<8xf32>
    %75 = vector.multi_reduction <add>, %74, %cst_23 [1] : vector<8x8xf32> to vector<8xf32>
    %76 = vector.shape_cast %75 : vector<8xf32> to vector<8x1xf32>
    %77 = tpu.reciprocal %76 {approx = true} : vector<8x1xf32> -> vector<8x1xf32>
    %78 = vector.broadcast %77 : vector<8x1xf32> to vector<8x8xf32>
    %79 = arith.mulf %74, %78 : vector<8x8xf32>
    %80 = arith.truncf %79 : vector<8x8xf32> to vector<8x8xbf16>
    %cst_24 = arith.constant dense<0.000000e+00> : vector<8x8xf32>
    %81 = tpu.matmul %80, %66, %cst_24 {dimension_numbers = #tpu.dot_dimension_numbers<[1], [0], [0], [1], [0, 0, 1, 1], [], []>} : vector<8x8xbf16>, vector<8x8xbf16>, vector<8x8xf32> -> vector<8x8xf32>
    %82 = tpu.concatenate %27, %45, %63, %81 in 1 : vector<8x8xf32>, vector<8x8xf32>, vector<8x8xf32>, vector<8x8xf32> -> vector<8x32xf32>
    %83 = vector.extract_strided_slice %6 {offsets = [8, 0], sizes = [8, 8], strides = [1, 1]} : vector<16x96xbf16> to vector<8x8xbf16>
    %84 = vector.extract_strided_slice %6 {offsets = [8, 32], sizes = [8, 8], strides = [1, 1]} : vector<16x96xbf16> to vector<8x8xbf16>
    %85 = vector.extract_strided_slice %6 {offsets = [8, 64], sizes = [8, 8], strides = [1, 1]} : vector<16x96xbf16> to vector<8x8xbf16>
    %cst_25 = arith.constant dense<0.000000e+00> : vector<8x8xf32>
    %86 = tpu.matmul %83, %84, %cst_25 {dimension_numbers = #tpu.dot_dimension_numbers<[1], [1], [0], [0], [0, 0, 1, 0], [], []>} : vector<8x8xbf16>, vector<8x8xbf16>, vector<8x8xf32> -> vector<8x8xf32>
    %cst_26 = arith.constant -1.000000e+30 : f32
    %87 = vector.broadcast %cst_26 : f32 to vector<8x8xf32>
    %88 = arith.select %9, %86, %87 : vector<8x8xi1>, vector<8x8xf32>
    %cst_27 = arith.constant dense<0xFF800000> : vector<8xf32>
    %89 = vector.multi_reduction <maximumf>, %88, %cst_27 [1] : vector<8x8xf32> to vector<8xf32>
    %90 = vector.shape_cast %89 : vector<8xf32> to vector<8x1xf32>
    %91 = vector.broadcast %90 : vector<8x1xf32> to vector<8x8xf32>
    %92 = arith.subf %88, %91 : vector<8x8xf32>
    %93 = math.exp %92 : vector<8x8xf32>
    %cst_28 = arith.constant dense<0.000000e+00> : vector<8xf32>
    %94 = vector.multi_reduction <add>, %93, %cst_28 [1] : vector<8x8xf32> to vector<8xf32>
    %95 = vector.shape_cast %94 : vector<8xf32> to vector<8x1xf32>
    %96 = tpu.reciprocal %95 {approx = true} : vector<8x1xf32> -> vector<8x1xf32>
    %97 = vector.broadcast %96 : vector<8x1xf32> to vector<8x8xf32>
    %98 = arith.mulf %93, %97 : vector<8x8xf32>
    %99 = arith.truncf %98 : vector<8x8xf32> to vector<8x8xbf16>
    %cst_29 = arith.constant dense<0.000000e+00> : vector<8x8xf32>
    %100 = tpu.matmul %99, %85, %cst_29 {dimension_numbers = #tpu.dot_dimension_numbers<[1], [0], [0], [1], [0, 0, 1, 1], [], []>} : vector<8x8xbf16>, vector<8x8xbf16>, vector<8x8xf32> -> vector<8x8xf32>
    %101 = vector.extract_strided_slice %6 {offsets = [8, 8], sizes = [8, 8], strides = [1, 1]} : vector<16x96xbf16> to vector<8x8xbf16>
    %102 = vector.extract_strided_slice %6 {offsets = [8, 40], sizes = [8, 8], strides = [1, 1]} : vector<16x96xbf16> to vector<8x8xbf16>
    %103 = vector.extract_strided_slice %6 {offsets = [8, 72], sizes = [8, 8], strides = [1, 1]} : vector<16x96xbf16> to vector<8x8xbf16>
    %cst_30 = arith.constant dense<0.000000e+00> : vector<8x8xf32>
    %104 = tpu.matmul %101, %102, %cst_30 {dimension_numbers = #tpu.dot_dimension_numbers<[1], [1], [0], [0], [0, 0, 1, 0], [], []>} : vector<8x8xbf16>, vector<8x8xbf16>, vector<8x8xf32> -> vector<8x8xf32>
    %cst_31 = arith.constant -1.000000e+30 : f32
    %105 = vector.broadcast %cst_31 : f32 to vector<8x8xf32>
    %106 = arith.select %9, %104, %105 : vector<8x8xi1>, vector<8x8xf32>
    %cst_32 = arith.constant dense<0xFF800000> : vector<8xf32>
    %107 = vector.multi_reduction <maximumf>, %106, %cst_32 [1] : vector<8x8xf32> to vector<8xf32>
    %108 = vector.shape_cast %107 : vector<8xf32> to vector<8x1xf32>
    %109 = vector.broadcast %108 : vector<8x1xf32> to vector<8x8xf32>
    %110 = arith.subf %106, %109 : vector<8x8xf32>
    %111 = math.exp %110 : vector<8x8xf32>
    %cst_33 = arith.constant dense<0.000000e+00> : vector<8xf32>
    %112 = vector.multi_reduction <add>, %111, %cst_33 [1] : vector<8x8xf32> to vector<8xf32>
    %113 = vector.shape_cast %112 : vector<8xf32> to vector<8x1xf32>
    %114 = tpu.reciprocal %113 {approx = true} : vector<8x1xf32> -> vector<8x1xf32>
    %115 = vector.broadcast %114 : vector<8x1xf32> to vector<8x8xf32>
    %116 = arith.mulf %111, %115 : vector<8x8xf32>
    %117 = arith.truncf %116 : vector<8x8xf32> to vector<8x8xbf16>
    %cst_34 = arith.constant dense<0.000000e+00> : vector<8x8xf32>
    %118 = tpu.matmul %117, %103, %cst_34 {dimension_numbers = #tpu.dot_dimension_numbers<[1], [0], [0], [1], [0, 0, 1, 1], [], []>} : vector<8x8xbf16>, vector<8x8xbf16>, vector<8x8xf32> -> vector<8x8xf32>
    %119 = vector.extract_strided_slice %6 {offsets = [8, 16], sizes = [8, 8], strides = [1, 1]} : vector<16x96xbf16> to vector<8x8xbf16>
    %120 = vector.extract_strided_slice %6 {offsets = [8, 48], sizes = [8, 8], strides = [1, 1]} : vector<16x96xbf16> to vector<8x8xbf16>
    %121 = vector.extract_strided_slice %6 {offsets = [8, 80], sizes = [8, 8], strides = [1, 1]} : vector<16x96xbf16> to vector<8x8xbf16>
    %cst_35 = arith.constant dense<0.000000e+00> : vector<8x8xf32>
    %122 = tpu.matmul %119, %120, %cst_35 {dimension_numbers = #tpu.dot_dimension_numbers<[1], [1], [0], [0], [0, 0, 1, 0], [], []>} : vector<8x8xbf16>, vector<8x8xbf16>, vector<8x8xf32> -> vector<8x8xf32>
    %cst_36 = arith.constant -1.000000e+30 : f32
    %123 = vector.broadcast %cst_36 : f32 to vector<8x8xf32>
    %124 = arith.select %9, %122, %123 : vector<8x8xi1>, vector<8x8xf32>
    %cst_37 = arith.constant dense<0xFF800000> : vector<8xf32>
    %125 = vector.multi_reduction <maximumf>, %124, %cst_37 [1] : vector<8x8xf32> to vector<8xf32>
    %126 = vector.shape_cast %125 : vector<8xf32> to vector<8x1xf32>
    %127 = vector.broadcast %126 : vector<8x1xf32> to vector<8x8xf32>
    %128 = arith.subf %124, %127 : vector<8x8xf32>
    %129 = math.exp %128 : vector<8x8xf32>
    %cst_38 = arith.constant dense<0.000000e+00> : vector<8xf32>
    %130 = vector.multi_reduction <add>, %129, %cst_38 [1] : vector<8x8xf32> to vector<8xf32>
    %131 = vector.shape_cast %130 : vector<8xf32> to vector<8x1xf32>
    %132 = tpu.reciprocal %131 {approx = true} : vector<8x1xf32> -> vector<8x1xf32>
    %133 = vector.broadcast %132 : vector<8x1xf32> to vector<8x8xf32>
    %134 = arith.mulf %129, %133 : vector<8x8xf32>
    %135 = arith.truncf %134 : vector<8x8xf32> to vector<8x8xbf16>
    %cst_39 = arith.constant dense<0.000000e+00> : vector<8x8xf32>
    %136 = tpu.matmul %135, %121, %cst_39 {dimension_numbers = #tpu.dot_dimension_numbers<[1], [0], [0], [1], [0, 0, 1, 1], [], []>} : vector<8x8xbf16>, vector<8x8xbf16>, vector<8x8xf32> -> vector<8x8xf32>
    %137 = vector.extract_strided_slice %6 {offsets = [8, 24], sizes = [8, 8], strides = [1, 1]} : vector<16x96xbf16> to vector<8x8xbf16>
    %138 = vector.extract_strided_slice %6 {offsets = [8, 56], sizes = [8, 8], strides = [1, 1]} : vector<16x96xbf16> to vector<8x8xbf16>
    %139 = vector.extract_strided_slice %6 {offsets = [8, 88], sizes = [8, 8], strides = [1, 1]} : vector<16x96xbf16> to vector<8x8xbf16>
    %cst_40 = arith.constant dense<0.000000e+00> : vector<8x8xf32>
    %140 = tpu.matmul %137, %138, %cst_40 {dimension_numbers = #tpu.dot_dimension_numbers<[1], [1], [0], [0], [0, 0, 1, 0], [], []>} : vector<8x8xbf16>, vector<8x8xbf16>, vector<8x8xf32> -> vector<8x8xf32>
    %cst_41 = arith.constant -1.000000e+30 : f32
    %141 = vector.broadcast %cst_41 : f32 to vector<8x8xf32>
    %142 = arith.select %9, %140, %141 : vector<8x8xi1>, vector<8x8xf32>
    %cst_42 = arith.constant dense<0xFF800000> : vector<8xf32>
    %143 = vector.multi_reduction <maximumf>, %142, %cst_42 [1] : vector<8x8xf32> to vector<8xf32>
    %144 = vector.shape_cast %143 : vector<8xf32> to vector<8x1xf32>
    %145 = vector.broadcast %144 : vector<8x1xf32> to vector<8x8xf32>
    %146 = arith.subf %142, %145 : vector<8x8xf32>
    %147 = math.exp %146 : vector<8x8xf32>
    %cst_43 = arith.constant dense<0.000000e+00> : vector<8xf32>
    %148 = vector.multi_reduction <add>, %147, %cst_43 [1] : vector<8x8xf32> to vector<8xf32>
    %149 = vector.shape_cast %148 : vector<8xf32> to vector<8x1xf32>
    %150 = tpu.reciprocal %149 {approx = true} : vector<8x1xf32> -> vector<8x1xf32>
    %151 = vector.broadcast %150 : vector<8x1xf32> to vector<8x8xf32>
    %152 = arith.mulf %147, %151 : vector<8x8xf32>
    %153 = arith.truncf %152 : vector<8x8xf32> to vector<8x8xbf16>
    %cst_44 = arith.constant dense<0.000000e+00> : vector<8x8xf32>
    %154 = tpu.matmul %153, %139, %cst_44 {dimension_numbers = #tpu.dot_dimension_numbers<[1], [0], [0], [1], [0, 0, 1, 1], [], []>} : vector<8x8xbf16>, vector<8x8xbf16>, vector<8x8xf32> -> vector<8x8xf32>
    %155 = tpu.concatenate %100, %118, %136, %154 in 1 : vector<8x8xf32>, vector<8x8xf32>, vector<8x8xf32>, vector<8x8xf32> -> vector<8x32xf32>
    %156 = tpu.concatenate %82, %155 in 0 : vector<8x32xf32>, vector<8x32xf32> -> vector<16x32xf32>
    %157 = arith.truncf %156 : vector<16x32xf32> to vector<16x32xbf16>
    %c0_45 = arith.constant 0 : index
    %c0_46 = arith.constant 0 : index
    %158 = vector.load %arg4[%c0_45, %c0_46] : memref<32x32xbf16, #tpu.memory_space<vmem>>, vector<32x32xbf16>
    %cst_47 = arith.constant dense<0.000000e+00> : vector<16x32xf32>
    %159 = tpu.matmul %157, %158, %cst_47 {dimension_numbers = #tpu.dot_dimension_numbers<[1], [0], [0], [1], [0, 0, 1, 1], [], []>} : vector<16x32xbf16>, vector<32x32xbf16>, vector<16x32xf32> -> vector<16x32xf32>
    %c0_48 = arith.constant 0 : index
    %c0_49 = arith.constant 0 : index
    %160 = vector.load %arg5[%c0_48, %c0_49] : memref<1x32xf32, #tpu.memory_space<vmem>>, vector<1x32xf32>
    %161 = vector.broadcast %160 : vector<1x32xf32> to vector<16x32xf32>
    %162 = arith.addf %159, %161 : vector<16x32xf32>
    %c0_50 = arith.constant 0 : index
    %c0_51 = arith.constant 0 : index
    %163 = vector.load %arg6[%c0_50, %c0_51] : memref<16x32xf32, #tpu.memory_space<vmem>>, vector<16x32xf32>
    tpu.vector_store %arg6[%c0_50, %c0_51], %162 {strides = array<i32>} : memref<16x32xf32, #tpu.memory_space<vmem>>, vector<16x32xf32>,
    return
  }
  func.func @transform_0(%arg0: i32) -> (i32, i32) {
    %c0_i32 = arith.constant 0 : i32
    %c0_i32_0 = arith.constant 0 : i32
    return %arg0, %c0_i32 : i32, i32
  }
  func.func @transform_1(%arg0: i32) -> (i32, i32) {
    %c0_i32 = arith.constant 0 : i32
    %c0_i32_0 = arith.constant 0 : i32
    %c0_i32_1 = arith.constant 0 : i32
    return %c0_i32, %c0_i32_0 : i32, i32
  }
  func.func @transform_2(%arg0: i32) -> (i32, i32) {
    %c0_i32 = arith.constant 0 : i32
    %c0_i32_0 = arith.constant 0 : i32
    %c0_i32_1 = arith.constant 0 : i32
    return %c0_i32, %c0_i32_0 : i32, i32
  }
  func.func @transform_3(%arg0: i32) -> (i32, i32) {
    %c0_i32 = arith.constant 0 : i32
    %c0_i32_0 = arith.constant 0 : i32
    %c0_i32_1 = arith.constant 0 : i32
    return %c0_i32, %c0_i32_0 : i32, i32
  }
  func.func @transform_4(%arg0: i32) -> (i32, i32) {
    %c0_i32 = arith.constant 0 : i32
    %c0_i32_0 = arith.constant 0 : i32
    %c0_i32_1 = arith.constant 0 : i32
    return %c0_i32, %c0_i32_0 : i32, i32
  }
  func.func @transform_5(%arg0: i32) -> (i32, i32) {
    %c0_i32 = arith.constant 0 : i32
    %c0_i32_0 = arith.constant 0 : i32
    return %arg0, %c0_i32 : i32, i32
  }
}

module attributes {stable_mosaic.version = 11 : i64} {
  func.func @_causal_self_attention_kernel(%arg0: i32, %arg1: memref<16x32xbf16, #tpu.memory_space<vmem>>, %arg2: memref<32x96xbf16, #tpu.memory_space<vmem>>, %arg3: memref<1x96xf32, #tpu.memory_space<vmem>>, %arg4: memref<32x32xbf16, #tpu.memory_space<vmem>>, %arg5: memref<1x32xf32, #tpu.memory_space<vmem>>, %arg6: memref<16x32xf32, #tpu.memory_space<vmem>>) attributes {dimension_semantics = [#tpu.dimension_semantics<parallel>], iteration_bounds = array<i64: 1>, scalar_prefetch = 0 : i64, scratch_operands = 0 : i64, tpu.core_type = #tpu.core_type<tc>, window_params = [{transform_indices = @transform_0, window_bounds = array<i64: 16, 32>}, {pipeline_mode = #tpu.pipeline_mode<synchronous>, transform_indices = @transform_1, window_bounds = array<i64: 32, 96>}, {pipeline_mode = #tpu.pipeline_mode<synchronous>, transform_indices = @transform_2, window_bounds = array<i64: 1, 96>}, {pipeline_mode = #tpu.pipeline_mode<synchronous>, transform_indices = @transform_3, window_bounds = array<i64: 32, 32>}, {pipeline_mode = #tpu.pipeline_mode<synchronous>, transform_indices = @transform_4, window_bounds = array<i64: 1, 32>}, {transform_indices = @transform_5, window_bounds = array<i64: 16, 32>}]} {
    %c0 = arith.constant 0 : index
    %c0_0 = arith.constant 0 : index
    %0 = vector.load %arg1[%c0, %c0_0] : memref<16x32xbf16, #tpu.memory_space<vmem>>, vector<16x32xbf16>
    %c0_1 = arith.constant 0 : index
    %c0_2 = arith.constant 0 : index
    %1 = vector.load %arg2[%c0_1, %c0_2] : memref<32x96xbf16, #tpu.memory_space<vmem>>, vector<32x96xbf16>
    %cst = arith.constant dense<0.000000e+00> : vector<16x96xf32>
    %2 = tpu.matmul %0, %1, %cst {dimension_numbers = #tpu.dot_dimension_numbers<[1], [0], [0], [1], [0, 0, 1, 1], [], []>} : vector<16x32xbf16>, vector<32x96xbf16>, vector<16x96xf32> -> vector<16x96xf32>
    %c0_3 = arith.constant 0 : index
    %c0_4 = arith.constant 0 : index
    %3 = vector.load %arg3[%c0_3, %c0_4] : memref<1x96xf32, #tpu.memory_space<vmem>>, vector<1x96xf32>
    %4 = vector.broadcast %3 : vector<1x96xf32> to vector<16x96xf32>
    %5 = arith.addf %2, %4 : vector<16x96xf32>
    %6 = arith.truncf %5 : vector<16x96xf32> to vector<16x96xbf16>
    %7 = tpu.iota {dimensions = array<i32: 0>} : vector<8x8xi32>
    %8 = tpu.iota {dimensions = array<i32: 1>} : vector<8x8xi32>
    %9 = arith.cmpi sle, %8, %7 : vector<8x8xi32>
    %10 = vector.extract_strided_slice %6 {offsets = [0, 0], sizes = [8, 8], strides = [1, 1]} : vector<16x96xbf16> to vector<8x8xbf16>
    %11 = vector.extract_strided_slice %6 {offsets = [0, 32], sizes = [8, 8], strides = [1, 1]} : vector<16x96xbf16> to vector<8x8xbf16>
    %12 = vector.extract_strided_slice %6 {offsets = [0, 64], sizes = [8, 8], strides = [1, 1]} : vector<16x96xbf16> to vector<8x8xbf16>
    %cst_5 = arith.constant dense<0.000000e+00> : vector<8x8xf32>
    %13 = tpu.matmul %10, %11, %cst_5 {dimension_numbers = #tpu.dot_dimension_numbers<[1], [1], [0], [0], [0, 0, 1, 0], [], []>} : vector<8x8xbf16>, vector<8x8xbf16>, vector<8x8xf32> -> vector<8x8xf32>
    %cst_6 = arith.constant -1.000000e+30 : f32
    %14 = vector.broadcast %cst_6 : f32 to vector<8x8xf32>
    %15 = arith.select %9, %13, %14 : vector<8x8xi1>, vector<8x8xf32>
    %cst_7 = arith.constant dense<0xFF800000> : vector<8xf32>
    %16 = vector.multi_reduction <maximumf>, %15, %cst_7 [1] : vector<8x8xf32> to vector<8xf32>
    %17 = vector.shape_cast %16 : vector<8xf32> to vector<8x1xf32>
    %18 = vector.broadcast %17 : vector<8x1xf32> to vector<8x8xf32>
    %19 = arith.subf %15, %18 : vector<8x8xf32>
    %20 = math.exp %19 : vector<8x8xf32>
    %cst_8 = arith.constant dense<0.000000e+00> : vector<8xf32>
    %21 = vector.multi_reduction <add>, %20, %cst_8 [1] : vector<8x8xf32> to vector<8xf32>
    %22 = vector.shape_cast %21 : vector<8xf32> to vector<8x1xf32>
    %23 = tpu.reciprocal %22 {approx = true} : vector<8x1xf32> -> vector<8x1xf32>
    %24 = vector.broadcast %23 : vector<8x1xf32> to vector<8x8xf32>
    %25 = arith.mulf %20, %24 : vector<8x8xf32>
    %26 = arith.truncf %25 : vector<8x8xf32> to vector<8x8xbf16>
    %cst_9 = arith.constant dense<0.000000e+00> : vector<8x8xf32>
    %27 = tpu.matmul %26, %12, %cst_9 {dimension_numbers = #tpu.dot_dimension_numbers<[1], [0], [0], [1], [0, 0, 1, 1], [], []>} : vector<8x8xbf16>, vector<8x8xbf16>, vector<8x8xf32> -> vector<8x8xf32>
    %28 = vector.extract_strided_slice %6 {offsets = [0, 8], sizes = [8, 8], strides = [1, 1]} : vector<16x96xbf16> to vector<8x8xbf16>
    %29 = vector.extract_strided_slice %6 {offsets = [0, 40], sizes = [8, 8], strides = [1, 1]} : vector<16x96xbf16> to vector<8x8xbf16>
    %30 = vector.extract_strided_slice %6 {offsets = [0, 72], sizes = [8, 8], strides = [1, 1]} : vector<16x96xbf16> to vector<8x8xbf16>
    %cst_10 = arith.constant dense<0.000000e+00> : vector<8x8xf32>
    %31 = tpu.matmul %28, %29, %cst_10 {dimension_numbers = #tpu.dot_dimension_numbers<[1], [1], [0], [0], [0, 0, 1, 0], [], []>} : vector<8x8xbf16>, vector<8x8xbf16>, vector<8x8xf32> -> vector<8x8xf32>
    %cst_11 = arith.constant -1.000000e+30 : f32
    %32 = vector.broadcast %cst_11 : f32 to vector<8x8xf32>
    %33 = arith.select %9, %31, %32 : vector<8x8xi1>, vector<8x8xf32>
    %cst_12 = arith.constant dense<0xFF800000> : vector<8xf32>
    %34 = vector.multi_reduction <maximumf>, %33, %cst_12 [1] : vector<8x8xf32> to vector<8xf32>
    %35 = vector.shape_cast %34 : vector<8xf32> to vector<8x1xf32>
    %36 = vector.broadcast %35 : vector<8x1xf32> to vector<8x8xf32>
    %37 = arith.subf %33, %36 : vector<8x8xf32>
    %38 = math.exp %37 : vector<8x8xf32>
    %cst_13 = arith.constant dense<0.000000e+00> : vector<8xf32>
    %39 = vector.multi_reduction <add>, %38, %cst_13 [1] : vector<8x8xf32> to vector<8xf32>
    %40 = vector.shape_cast %39 : vector<8xf32> to vector<8x1xf32>
    %41 = tpu.reciprocal %40 {approx = true} : vector<8x1xf32> -> vector<8x1xf32>
    %42 = vector.broadcast %41 : vector<8x1xf32> to vector<8x8xf32>
    %43 = arith.mulf %38, %42 : vector<8x8xf32>
    %44 = arith.truncf %43 : vector<8x8xf32> to vector<8x8xbf16>
    %cst_14 = arith.constant dense<0.000000e+00> : vector<8x8xf32>
    %45 = tpu.matmul %44, %30, %cst_14 {dimension_numbers = #tpu.dot_dimension_numbers<[1], [0], [0], [1], [0, 0, 1, 1], [], []>} : vector<8x8xbf16>, vector<8x8xbf16>, vector<8x8xf32> -> vector<8x8xf32>
    %46 = vector.extract_strided_slice %6 {offsets = [0, 16], sizes = [8, 8], strides = [1, 1]} : vector<16x96xbf16> to vector<8x8xbf16>
    %47 = vector.extract_strided_slice %6 {offsets = [0, 48], sizes = [8, 8], strides = [1, 1]} : vector<16x96xbf16> to vector<8x8xbf16>
    %48 = vector.extract_strided_slice %6 {offsets = [0, 80], sizes = [8, 8], strides = [1, 1]} : vector<16x96xbf16> to vector<8x8xbf16>
    %cst_15 = arith.constant dense<0.000000e+00> : vector<8x8xf32>
    %49 = tpu.matmul %46, %47, %cst_15 {dimension_numbers = #tpu.dot_dimension_numbers<[1], [1], [0], [0], [0, 0, 1, 0], [], []>} : vector<8x8xbf16>, vector<8x8xbf16>, vector<8x8xf32> -> vector<8x8xf32>
    %cst_16 = arith.constant -1.000000e+30 : f32
    %50 = vector.broadcast %cst_16 : f32 to vector<8x8xf32>
    %51 = arith.select %9, %49, %50 : vector<8x8xi1>, vector<8x8xf32>
    %cst_17 = arith.constant dense<0xFF800000> : vector<8xf32>
    %52 = vector.multi_reduction <maximumf>, %51, %cst_17 [1] : vector<8x8xf32> to vector<8xf32>
    %53 = vector.shape_cast %52 : vector<8xf32> to vector<8x1xf32>
    %54 = vector.broadcast %53 : vector<8x1xf32> to vector<8x8xf32>
    %55 = arith.subf %51, %54 : vector<8x8xf32>
    %56 = math.exp %55 : vector<8x8xf32>
    %cst_18 = arith.constant dense<0.000000e+00> : vector<8xf32>
    %57 = vector.multi_reduction <add>, %56, %cst_18 [1] : vector<8x8xf32> to vector<8xf32>
    %58 = vector.shape_cast %57 : vector<8xf32> to vector<8x1xf32>
    %59 = tpu.reciprocal %58 {approx = true} : vector<8x1xf32> -> vector<8x1xf32>
    %60 = vector.broadcast %59 : vector<8x1xf32> to vector<8x8xf32>
    %61 = arith.mulf %56, %60 : vector<8x8xf32>
    %62 = arith.truncf %61 : vector<8x8xf32> to vector<8x8xbf16>
    %cst_19 = arith.constant dense<0.000000e+00> : vector<8x8xf32>
    %63 = tpu.matmul %62, %48, %cst_19 {dimension_numbers = #tpu.dot_dimension_numbers<[1], [0], [0], [1], [0, 0, 1, 1], [], []>} : vector<8x8xbf16>, vector<8x8xbf16>, vector<8x8xf32> -> vector<8x8xf32>
    %64 = vector.extract_strided_slice %6 {offsets = [0, 24], sizes = [8, 8], strides = [1, 1]} : vector<16x96xbf16> to vector<8x8xbf16>
    %65 = vector.extract_strided_slice %6 {offsets = [0, 56], sizes = [8, 8], strides = [1, 1]} : vector<16x96xbf16> to vector<8x8xbf16>
    %66 = vector.extract_strided_slice %6 {offsets = [0, 88], sizes = [8, 8], strides = [1, 1]} : vector<16x96xbf16> to vector<8x8xbf16>
    %cst_20 = arith.constant dense<0.000000e+00> : vector<8x8xf32>
    %67 = tpu.matmul %64, %65, %cst_20 {dimension_numbers = #tpu.dot_dimension_numbers<[1], [1], [0], [0], [0, 0, 1, 0], [], []>} : vector<8x8xbf16>, vector<8x8xbf16>, vector<8x8xf32> -> vector<8x8xf32>
    %cst_21 = arith.constant -1.000000e+30 : f32
    %68 = vector.broadcast %cst_21 : f32 to vector<8x8xf32>
    %69 = arith.select %9, %67, %68 : vector<8x8xi1>, vector<8x8xf32>
    %cst_22 = arith.constant dense<0xFF800000> : vector<8xf32>
    %70 = vector.multi_reduction <maximumf>, %69, %cst_22 [1] : vector<8x8xf32> to vector<8xf32>
    %71 = vector.shape_cast %70 : vector<8xf32> to vector<8x1xf32>
    %72 = vector.broadcast %71 : vector<8x1xf32> to vector<8x8xf32>
    %73 = arith.subf %69, %72 : vector<8x8xf32>
    %74 = math.exp %73 : vector<8x8xf32>
    %cst_23 = arith.constant dense<0.000000e+00> : vector<8xf32>
    %75 = vector.multi_reduction <add>, %74, %cst_23 [1] : vector<8x8xf32> to vector<8xf32>
    %76 = vector.shape_cast %75 : vector<8xf32> to vector<8x1xf32>
    %77 = tpu.reciprocal %76 {approx = true} : vector<8x1xf32> -> vector<8x1xf32>
    %78 = vector.broadcast %77 : vector<8x1xf32> to vector<8x8xf32>
    %79 = arith.mulf %74, %78 : vector<8x8xf32>
    %80 = arith.truncf %79 : vector<8x8xf32> to vector<8x8xbf16>
    %cst_24 = arith.constant dense<0.000000e+00> : vector<8x8xf32>
    %81 = tpu.matmul %80, %66, %cst_24 {dimension_numbers = #tpu.dot_dimension_numbers<[1], [0], [0], [1], [0, 0, 1, 1], [], []>} : vector<8x8xbf16>, vector<8x8xbf16>, vector<8x8xf32> -> vector<8x8xf32>
    %82 = tpu.concatenate %27, %45, %63, %81 in 1 : vector<8x8xf32>, vector<8x8xf32>, vector<8x8xf32>, vector<8x8xf32> -> vector<8x32xf32>
    %83 = vector.extract_strided_slice %6 {offsets = [8, 0], sizes = [8, 8], strides = [1, 1]} : vector<16x96xbf16> to vector<8x8xbf16>
    %84 = vector.extract_strided_slice %6 {offsets = [8, 32], sizes = [8, 8], strides = [1, 1]} : vector<16x96xbf16> to vector<8x8xbf16>
    %85 = vector.extract_strided_slice %6 {offsets = [8, 64], sizes = [8, 8], strides = [1, 1]} : vector<16x96xbf16> to vector<8x8xbf16>
    %cst_25 = arith.constant dense<0.000000e+00> : vector<8x8xf32>
    %86 = tpu.matmul %83, %84, %cst_25 {dimension_numbers = #tpu.dot_dimension_numbers<[1], [1], [0], [0], [0, 0, 1, 0], [], []>} : vector<8x8xbf16>, vector<8x8xbf16>, vector<8x8xf32> -> vector<8x8xf32>
    %cst_26 = arith.constant -1.000000e+30 : f32
    %87 = vector.broadcast %cst_26 : f32 to vector<8x8xf32>
    %88 = arith.select %9, %86, %87 : vector<8x8xi1>, vector<8x8xf32>
    %cst_27 = arith.constant dense<0xFF800000> : vector<8xf32>
    %89 = vector.multi_reduction <maximumf>, %88, %cst_27 [1] : vector<8x8xf32> to vector<8xf32>
    %90 = vector.shape_cast %89 : vector<8xf32> to vector<8x1xf32>
    %91 = vector.broadcast %90 : vector<8x1xf32> to vector<8x8xf32>
    %92 = arith.subf %88, %91 : vector<8x8xf32>
    %93 = math.exp %92 : vector<8x8xf32>
    %cst_28 = arith.constant dense<0.000000e+00> : vector<8xf32>
    %94 = vector.multi_reduction <add>, %93, %cst_28 [1] : vector<8x8xf32> to vector<8xf32>
    %95 = vector.shape_cast %94 : vector<8xf32> to vector<8x1xf32>
    %96 = tpu.reciprocal %95 {approx = true} : vector<8x1xf32> -> vector<8x1xf32>
    %97 = vector.broadcast %96 : vector<8x1xf32> to vector<8x8xf32>
    %98 = arith.mulf %93, %97 : vector<8x8xf32>
    %99 = arith.truncf %98 : vector<8x8xf32> to vector<8x8xbf16>
    %cst_29 = arith.constant dense<0.000000e+00> : vector<8x8xf32>
    %100 = tpu.matmul %99, %85, %cst_29 {dimension_numbers = #tpu.dot_dimension_numbers<[1], [0], [0], [1], [0, 0, 1, 1], [], []>} : vector<8x8xbf16>, vector<8x8xbf16>, vector<8x8xf32> -> vector<8x8xf32>
    %101 = vector.extract_strided_slice %6 {offsets = [8, 8], sizes = [8, 8], strides = [1, 1]} : vector<16x96xbf16> to vector<8x8xbf16>
    %102 = vector.extract_strided_slice %6 {offsets = [8, 40], sizes = [8, 8], strides = [1, 1]} : vector<16x96xbf16> to vector<8x8xbf16>
    %103 = vector.extract_strided_slice %6 {offsets = [8, 72], sizes = [8, 8], strides = [1, 1]} : vector<16x96xbf16> to vector<8x8xbf16>
    %cst_30 = arith.constant dense<0.000000e+00> : vector<8x8xf32>
    %104 = tpu.matmul %101, %102, %cst_30 {dimension_numbers = #tpu.dot_dimension_numbers<[1], [1], [0], [0], [0, 0, 1, 0], [], []>} : vector<8x8xbf16>, vector<8x8xbf16>, vector<8x8xf32> -> vector<8x8xf32>
    %cst_31 = arith.constant -1.000000e+30 : f32
    %105 = vector.broadcast %cst_31 : f32 to vector<8x8xf32>
    %106 = arith.select %9, %104, %105 : vector<8x8xi1>, vector<8x8xf32>
    %cst_32 = arith.constant dense<0xFF800000> : vector<8xf32>
    %107 = vector.multi_reduction <maximumf>, %106, %cst_32 [1] : vector<8x8xf32> to vector<8xf32>
    %108 = vector.shape_cast %107 : vector<8xf32> to vector<8x1xf32>
    %109 = vector.broadcast %108 : vector<8x1xf32> to vector<8x8xf32>
    %110 = arith.subf %106, %109 : vector<8x8xf32>
    %111 = math.exp %110 : vector<8x8xf32>
    %cst_33 = arith.constant dense<0.000000e+00> : vector<8xf32>
    %112 = vector.multi_reduction <add>, %111, %cst_33 [1] : vector<8x8xf32> to vector<8xf32>
    %113 = vector.shape_cast %112 : vector<8xf32> to vector<8x1xf32>
    %114 = tpu.reciprocal %113 {approx = true} : vector<8x1xf32> -> vector<8x1xf32>
    %115 = vector.broadcast %114 : vector<8x1xf32> to vector<8x8xf32>
    %116 = arith.mulf %111, %115 : vector<8x8xf32>
    %117 = arith.truncf %116 : vector<8x8xf32> to vector<8x8xbf16>
    %cst_34 = arith.constant dense<0.000000e+00> : vector<8x8xf32>
    %118 = tpu.matmul %117, %103, %cst_34 {dimension_numbers = #tpu.dot_dimension_numbers<[1], [0], [0], [1], [0, 0, 1, 1], [], []>} : vector<8x8xbf16>, vector<8x8xbf16>, vector<8x8xf32> -> vector<8x8xf32>
    %119 = vector.extract_strided_slice %6 {offsets = [8, 16], sizes = [8, 8], strides = [1, 1]} : vector<16x96xbf16> to vector<8x8xbf16>
    %120 = vector.extract_strided_slice %6 {offsets = [8, 48], sizes = [8, 8], strides = [1, 1]} : vector<16x96xbf16> to vector<8x8xbf16>
    %121 = vector.extract_strided_slice %6 {offsets = [8, 80], sizes = [8, 8], strides = [1, 1]} : vector<16x96xbf16> to vector<8x8xbf16>
    %cst_35 = arith.constant dense<0.000000e+00> : vector<8x8xf32>
    %122 = tpu.matmul %119, %120, %cst_35 {dimension_numbers = #tpu.dot_dimension_numbers<[1], [1], [0], [0], [0, 0, 1, 0], [], []>} : vector<8x8xbf16>, vector<8x8xbf16>, vector<8x8xf32> -> vector<8x8xf32>
    %cst_36 = arith.constant -1.000000e+30 : f32
    %123 = vector.broadcast %cst_36 : f32 to vector<8x8xf32>
    %124 = arith.select %9, %122, %123 : vector<8x8xi1>, vector<8x8xf32>
    %cst_37 = arith.constant dense<0xFF800000> : vector<8xf32>
    %125 = vector.multi_reduction <maximumf>, %124, %cst_37 [1] : vector<8x8xf32> to vector<8xf32>
    %126 = vector.shape_cast %125 : vector<8xf32> to vector<8x1xf32>
    %127 = vector.broadcast %126 : vector<8x1xf32> to vector<8x8xf32>
    %128 = arith.subf %124, %127 : vector<8x8xf32>
    %129 = math.exp %128 : vector<8x8xf32>
    %cst_38 = arith.constant dense<0.000000e+00> : vector<8xf32>
    %130 = vector.multi_reduction <add>, %129, %cst_38 [1] : vector<8x8xf32> to vector<8xf32>
    %131 = vector.shape_cast %130 : vector<8xf32> to vector<8x1xf32>
    %132 = tpu.reciprocal %131 {approx = true} : vector<8x1xf32> -> vector<8x1xf32>
    %133 = vector.broadcast %132 : vector<8x1xf32> to vector<8x8xf32>
    %134 = arith.mulf %129, %133 : vector<8x8xf32>
    %135 = arith.truncf %134 : vector<8x8xf32> to vector<8x8xbf16>
    %cst_39 = arith.constant dense<0.000000e+00> : vector<8x8xf32>
    %136 = tpu.matmul %135, %121, %cst_39 {dimension_numbers = #tpu.dot_dimension_numbers<[1], [0], [0], [1], [0, 0, 1, 1], [], []>} : vector<8x8xbf16>, vector<8x8xbf16>, vector<8x8xf32> -> vector<8x8xf32>
    %137 = vector.extract_strided_slice %6 {offsets = [8, 24], sizes = [8, 8], strides = [1, 1]} : vector<16x96xbf16> to vector<8x8xbf16>
    %138 = vector.extract_strided_slice %6 {offsets = [8, 56], sizes = [8, 8], strides = [1, 1]} : vector<16x96xbf16> to vector<8x8xbf16>
    %139 = vector.extract_strided_slice %6 {offsets = [8, 88], sizes = [8, 8], strides = [1, 1]} : vector<16x96xbf16> to vector<8x8xbf16>
    %cst_40 = arith.constant dense<0.000000e+00> : vector<8x8xf32>
    %140 = tpu.matmul %137, %138, %cst_40 {dimension_numbers = #tpu.dot_dimension_numbers<[1], [1], [0], [0], [0, 0, 1, 0], [], []>} : vector<8x8xbf16>, vector<8x8xbf16>, vector<8x8xf32> -> vector<8x8xf32>
    %cst_41 = arith.constant -1.000000e+30 : f32
    %141 = vector.broadcast %cst_41 : f32 to vector<8x8xf32>
    %142 = arith.select %9, %140, %141 : vector<8x8xi1>, vector<8x8xf32>
    %cst_42 = arith.constant dense<0xFF800000> : vector<8xf32>
    %143 = vector.multi_reduction <maximumf>, %142, %cst_42 [1] : vector<8x8xf32> to vector<8xf32>
    %144 = vector.shape_cast %143 : vector<8xf32> to vector<8x1xf32>
    %145 = vector.broadcast %144 : vector<8x1xf32> to vector<8x8xf32>
    %146 = arith.subf %142, %145 : vector<8x8xf32>
    %147 = math.exp %146 : vector<8x8xf32>
    %cst_43 = arith.constant dense<0.000000e+00> : vector<8xf32>
    %148 = vector.multi_reduction <add>, %147, %cst_43 [1] : vector<8x8xf32> to vector<8xf32>
    %149 = vector.shape_cast %148 : vector<8xf32> to vector<8x1xf32>
    %150 = tpu.reciprocal %149 {approx = true} : vector<8x1xf32> -> vector<8x1xf32>
    %151 = vector.broadcast %150 : vector<8x1xf32> to vector<8x8xf32>
    %152 = arith.mulf %147, %151 : vector<8x8xf32>
    %153 = arith.truncf %152 : vector<8x8xf32> to vector<8x8xbf16>
    %cst_44 = arith.constant dense<0.000000e+00> : vector<8x8xf32>
    %154 = tpu.matmul %153, %139, %cst_44 {dimension_numbers = #tpu.dot_dimension_numbers<[1], [0], [0], [1], [0, 0, 1, 1], [], []>} : vector<8x8xbf16>, vector<8x8xbf16>, vector<8x8xf32> -> vector<8x8xf32>
    %155 = tpu.concatenate %100, %118, %136, %154 in 1 : vector<8x8xf32>, vector<8x8xf32>, vector<8x8xf32>, vector<8x8xf32> -> vector<8x32xf32>
    %156 = tpu.concatenate %82, %155 in 0 : vector<8x32xf32>, vector<8x32xf32> -> vector<16x32xf32>
    %157 = arith.truncf %156 : vector<16x32xf32> to vector<16x32xbf16>
    %c0_45 = arith.constant 0 : index
    %c0_46 = arith.constant 0 : index
    %158 = vector.load %arg4[%c0_45, %c0_46] : memref<32x32xbf16, #tpu.memory_space<vmem>>, vector<32x32xbf16>
    %cst_47 = arith.constant dense<0.000000e+00> : vector<16x32xf32>
    %159 = tpu.matmul %157, %158, %cst_47 {dimension_numbers = #tpu.dot_dimension_numbers<[1], [0], [0], [1], [0, 0, 1, 1], [], []>} : vector<16x32xbf16>, vector<32x32xbf16>, vector<16x32xf32> -> vector<16x32xf32>
    %c0_48 = arith.constant 0 : index
    %c0_49 = arith.constant 0 : index
    %160 = vector.load %arg5[%c0_48, %c0_49] : memref<1x32xf32, #tpu.memory_space<vmem>>, vector<1x32xf32>
    %161 = vector.broadcast %160 : vector<1x32xf32> to vector<16x32xf32>
    %162 = arith.addf %159, %161 : vector<16x32xf32>
    %c0_50 = arith.constant 0 : index
    %c0_51 = arith.constant 0 : index
    %163 = vector.load %arg6[%c0_50, %c0_51] : memref<16x32xf32, #tpu.memory_space<vmem>>, vector<16x32xf32>
    tpu.vector_store %arg6[%c0_50, %c0_51], %162 {strides = array<i32>} : memref<16x32xf32, #tpu.memory_space<vmem>>, vector<16x32xf32>,
    return
  }
  func.func @transform_0(%arg0: i32) -> (i32, i32) {
    %c0_i32 = arith.constant 0 : i32
    %c0_i32_0 = arith.constant 0 : i32
    return %arg0, %c0_i32 : i32, i32
  }
  func.func @transform_1(%arg0: i32) -> (i32, i32) {
    %c0_i32 = arith.constant 0 : i32
    %c0_i32_0 = arith.constant 0 : i32
    %c0_i32_1 = arith.constant 0 : i32
    return %c0_i32, %c0_i32_0 : i32, i32
  }
  func.func @transform_2(%arg0: i32) -> (i32, i32) {
    %c0_i32 = arith.constant 0 : i32
    %c0_i32_0 = arith.constant 0 : i32
    %c0_i32_1 = arith.constant 0 : i32
    return %c0_i32, %c0_i32_0 : i32, i32
  }
  func.func @transform_3(%arg0: i32) -> (i32, i32) {
    %c0_i32 = arith.constant 0 : i32
    %c0_i32_0 = arith.constant 0 : i32
    %c0_i32_1 = arith.constant 0 : i32
    return %c0_i32, %c0_i32_0 : i32, i32
  }
  func.func @transform_4(%arg0: i32) -> (i32, i32) {
    %c0_i32 = arith.constant 0 : i32
    %c0_i32_0 = arith.constant 0 : i32
    %c0_i32_1 = arith.constant 0 : i32
    return %c0_i32, %c0_i32_0 : i32, i32
  }
  func.func @transform_5(%arg0: i32) -> (i32, i32) {
    %c0_i32 = arith.constant 0 : i32
    %c0_i32_0 = arith.constant 0 : i32
    return %arg0, %c0_i32 : i32, i32
  }
}

</mosaic_0001>

<llo_original>
// kernel: tpu_custom_call.1
$region0: #{tpu_custom_call.1}
  #allocation0 [shape = 'u32[]', space=smem, size = 0x4, offset = 0x4, fixed_abs, tag = 'smem constant byte address 0x4 - core index']
  #allocation1 [shape = 'u32[144,128]{1,0:T(1,128)}', space=vmem, size = 0x12000, scoped, tag = 'internal scratch']
  %s0 = inlined_call_operand.hbm [shape: bf16[16,32], index: 0, kind: input, shape index: {}]
  %s1 = inlined_call_operand.hbm [shape: bf16[32,96], index: 1, kind: input, shape index: {}]
  %s2 = inlined_call_operand.vmem [shape: f32[1,96], index: 2, kind: input, shape index: {}]
  %s3 = inlined_call_operand.hbm [shape: bf16[32,32], index: 3, kind: input, shape index: {}]
  %s4 = inlined_call_operand.vmem [shape: f32[1,32], index: 4, kind: input, shape index: {}]
  %s5 = inlined_call_operand.hbm [shape: f32[16,32], index: 5, kind: output, shape index: {}]
  %s6 = sld [smem:[#allocation0]]
  $region42: #{tpu_custom_call.1} parent=0
    _
  %s8 = ssub.s32 1, %s6
  %s9 = scalar_select 0, %s8, %s6
  $region1: #{tpu_custom_call.1} parent=0
    #allocation2 [shape = 'u8[4096]{0}', space=vmem, size = 0x1000, scoped, tag = 'input window, operand 0, single buffered']
    #allocation3 [shape = 's32[1]{0}', space=sflag, size = 0x4, scoped, tag = 'scoped memory for tpu_custom_call.1']
    #allocation4 [shape = 's32[1]{0}', space=sflag, size = 0x4, scoped, tag = 'scoped memory for tpu_custom_call.1']
    #allocation5 [shape = 'u8[8192]{0}', space=vmem, size = 0x2000, scoped, tag = 'input window, operand 1, single buffered']
    #allocation6 [shape = 's32[1]{0}', space=sflag, size = 0x4, scoped, tag = 'scoped memory for tpu_custom_call.1']
    #allocation7 [shape = 'u8[8192]{0}', space=vmem, size = 0x2000, scoped, tag = 'input window, operand 3, single buffered']
    #allocation8 [shape = 'u8[8192]{0}', space=vmem, size = 0x2000, scoped, tag = 'output window, operand 0, single buffered']
    %10 = vsyncpa [#allocation3], 0
    %11 = vsyncpa [#allocation6], 0
    %12 = vsyncpa [#allocation4], 0
    // Predicated region
    $region2: #{tpu_custom_call.1} parent=1 // pred_check
      _
    $region3: #{tpu_custom_call.1} parent=1 // pred_check_branch
      %14 = sbr.rel (0) target = $region5
    $region4: #{tpu_custom_call.1} parent=1 // pred_region
      %s16 = ssub.s32 128, 128
      %17 = vsyncadd [#allocation3], %s16
      %s18 = sshll.u32 [#allocation2], 4
      %s19 = int_to_ptr.vmem [resolvable:$true] %s18
      %24 = dma.hbm_to_vmem [thread:$0]  %s0, 128, %s19, [#allocation3], 64, 64, 4
    $region5: #{tpu_custom_call.1} parent=1 // pred_fallthru
      _
    // Predicated region
    $region6: #{tpu_custom_call.1} parent=1 // pred_check
      _
    $region7: #{tpu_custom_call.1} parent=1 // pred_check_branch
      %26 = sbr.rel (0) target = $region9
    $region8: #{tpu_custom_call.1} parent=1 // pred_region
      %s28 = ssub.s32 256, 256
      %29 = vsyncadd [#allocation6], %s28
      %s30 = sshll.u32 [#allocation5], 4
      %s31 = int_to_ptr.vmem [resolvable:$true] %s30
      %36 = dma.hbm_to_vmem [thread:$0]  %s1, 256, %s31, [#allocation6], 64, 64, 4
    $region9: #{tpu_custom_call.1} parent=1 // pred_fallthru
      _
    // Predicated region
    $region10: #{tpu_custom_call.1} parent=1 // pred_check
      _
    $region11: #{tpu_custom_call.1} parent=1 // pred_check_branch
      %38 = sbr.rel (0) target = $region13
    $region12: #{tpu_custom_call.1} parent=1 // pred_region
      _
    $region13: #{tpu_custom_call.1} parent=1 // pred_fallthru
      _
    // Predicated region
    $region14: #{tpu_custom_call.1} parent=1 // pred_check
      _
    $region15: #{tpu_custom_call.1} parent=1 // pred_check_branch
      %40 = sbr.rel (0) target = $region17
    $region16: #{tpu_custom_call.1} parent=1 // pred_region
      %s42 = ssub.s32 256, 256
      %43 = vsyncadd [#allocation6], %s42
      %s44 = sshll.u32 [#allocation7], 4
      %s45 = int_to_ptr.vmem [resolvable:$true] %s44
      %50 = dma.hbm_to_vmem [thread:$0]  %s3, 256, %s45, [#allocation6], 64, 64, 4
    $region17: #{tpu_custom_call.1} parent=1 // pred_fallthru
      _
    // Predicated region
    $region18: #{tpu_custom_call.1} parent=1 // pred_check
      _
    $region19: #{tpu_custom_call.1} parent=1 // pred_check_branch
      %52 = sbr.rel (0) target = $region21
    $region20: #{tpu_custom_call.1} parent=1 // pred_region
      _
    $region21: #{tpu_custom_call.1} parent=1 // pred_fallthru
      _
    // Predicated region
    $region22: #{tpu_custom_call.1} parent=1 // pred_check
      _
    $region23: #{tpu_custom_call.1} parent=1 // pred_check_branch
      %54 = sbr.rel (0) target = $region25
    $region24: #{tpu_custom_call.1} parent=1 // pred_region
      %55 = dma.done [#allocation3], 128
    $region25: #{tpu_custom_call.1} parent=1 // pred_fallthru
      _
    // Predicated region
    $region26: #{tpu_custom_call.1} parent=1 // pred_check
      _
    $region27: #{tpu_custom_call.1} parent=1 // pred_check_branch
      %57 = sbr.rel (0) target = $region29
    $region28: #{tpu_custom_call.1} parent=1 // pred_region
      %58 = dma.done [#allocation6], 256
    $region29: #{tpu_custom_call.1} parent=1 // pred_fallthru
      _
    // Predicated region
    $region30: #{tpu_custom_call.1} parent=1 // pred_check
      _
    $region31: #{tpu_custom_call.1} parent=1 // pred_check_branch
      %60 = sbr.rel (0) target = $region33
    $region32: #{tpu_custom_call.1} parent=1 // pred_region
      %61 = dma.done [#allocation6], 256
    $region33: #{tpu_custom_call.1} parent=1 // pred_fallthru
      _
    %v63 = vld [vmem:[#allocation2] sm:$0xf]
    %v64 = vld [vmem:[#allocation2 + $0x4] sm:$0xf]
    %v65 = vld [vmem:[#allocation5] sm:$0xf]
    %v66 = vld [vmem:[#allocation5 + $0x4] sm:$0xf]
    %v67 = vld [vmem:[#allocation5 + $0x8] sm:$0xf]
    %v68 = vld [vmem:[#allocation5 + $0xc] sm:$0xf]
    %v69 = vld [vmem:[%s2] sm:$0x1]
    %v71 = vlaneseq
    %v72 = vshrl.u32 %v71, 7
    %v73 = vsub.s32 0, %v72
    %v74 = vrot.slane %v69, %v73
    %v78 = vunpack.c.l.b16 %v63
    %v79 = vunpack.c.l.b16 %v64
    %v80 = vpack.c.b16 %v79, %v78
    %v85 = vunpack.c.l.b16 %v65
    %v86 = vunpack.c.l.b16 %v66
    %v87 = vunpack.c.l.b16 %v67
    %v88 = vunpack.c.l.b16 %v68
    %v89 = vpack.c.b16 %v86, %v85
    %v90 = vpack.c.b16 %v88, %v87
    %vm93 = vcmask 261120
    %v95 = vsel %vm93, %v80, 0
    %97 = vmatprep.subr.bf16.mxu0 0
    %98 = vmatpush1.bf16.msra.mxu0 %v89
    %99 = vmatprep.subr.bf16.mxu0 0
    %100 = vmatpush1.bf16.msra.mxu0 %v90
    %101 = vmatprep.subr.bf16.mxu0 0
    %102 = vmatpush1.bf16.msra.mxu0 0
    %103 = vmatprep.subr.bf16.mxu0 0
    %104 = vmatpush1.bf16.msra.mxu0 0
    %105 = vmatprep.subr.bf16.mxu0 0
    %106 = vmatpush1.bf16.msra.mxu0 0
    %107 = vmatprep.subr.bf16.mxu0 0
    %108 = vmatpush1.bf16.msra.mxu0 0
    %109 = vmatprep.subr.bf16.mxu0 0
    %110 = vmatpush1.bf16.msra.mxu0 0
    %111 = vmatprep.subr.bf16.mxu0 0
    %112 = vmatpush1.bf16.msra.mxu0 0
    %113 = vmatprep.subr.bf16.mxu0 0
    %114 = vmatpush1.bf16.msra.mxu0 0
    %115 = vmatprep.subr.bf16.mxu0 0
    %116 = vmatpush1.bf16.msra.mxu0 0
    %117 = vmatprep.subr.bf16.mxu0 0
    %118 = vmatpush1.bf16.msra.mxu0 0
    %119 = vmatprep.subr.bf16.mxu0 0
    %120 = vmatpush1.bf16.msra.mxu0 0
    %121 = vmatprep.subr.bf16.mxu0 0
    %122 = vmatpush1.bf16.msra.mxu0 0
    %123 = vmatprep.subr.bf16.mxu0 0
    %124 = vmatpush1.bf16.msra.mxu0 0
    %125 = vmatprep.subr.bf16.mxu0 0
    %126 = vmatpush1.bf16.msra.mxu0 0
    %127 = vmatprep.subr.bf16.mxu0 0
    %128 = vmatpush1.bf16.msra.mxu0 0
    %129 = vmatprep.mubr.bf16.mxu0 0
    %130 = vmatmul.mubr.bf16.gmra.mrb[0].mxu0 %v95
    %v131 = vpop.f32.mrb[0].mxu0
    %v132 = vadd.f32 %v74, %v131
    %v133 = vpop.f32.mrb[0].mxu0
    %v134 = vpop.f32.mrb[0].mxu0
    %v135 = vadd.f32 %v74, %v134
    %v136 = vpop.f32.mrb[0].mxu0
    %137 = vdwg.mxu0
    %v138 = vpack.c.bf16 %v135, %v132
    %v139 = vlaneseq
    %v140 = vshrl.u32 %v139, 7
    %v141 = vlaneseq
    %v142 = vand.u32 %v141, 127
    %vm143 = vcmp.le.s32.totalorder %v142, %v140
    %145 = vrot.lane.b32.xlu0 %v138, 96
    %v146 = vpop.permute.xlu0 %145
    %vm147 = vcmask 64512
    %v149 = vsel %vm147, %v138, 0
    %v152 = vsel %vm147, %v146, 0
    %154 = vmatprep.subr.bf16.mxu0 0
    %155 = vmatpush1.bf16.xpose.msra.mxu0 %v152
    %156 = vmatprep.subr.bf16.mxu0 0
    %157 = vmatpush1.bf16.xpose.msra.mxu0 0
    %158 = vmatprep.subr.bf16.mxu0 0
    %159 = vmatpush1.bf16.xpose.msra.mxu0 0
    %160 = vmatprep.subr.bf16.mxu0 0
    %161 = vmatpush1.bf16.xpose.msra.mxu0 0
    %162 = vmatprep.subr.bf16.mxu0 0
    %163 = vmatpush1.bf16.xpose.msra.mxu0 0
    %164 = vmatprep.subr.bf16.mxu0 0
    %165 = vmatpush1.bf16.xpose.msra.mxu0 0
    %166 = vmatprep.subr.bf16.mxu0 0
    %167 = vmatpush1.bf16.xpose.msra.mxu0 0
    %168 = vmatprep.subr.bf16.mxu0 0
    %169 = vmatpush1.bf16.xpose.msra.mxu0 0
    %170 = vmatprep.subr.bf16.mxu0 0
    %171 = vmatpush1.bf16.xpose.msra.mxu0 0
    %172 = vmatprep.subr.bf16.mxu0 0
    %173 = vmatpush1.bf16.xpose.msra.mxu0 0
    %174 = vmatprep.subr.bf16.mxu0 0
    %175 = vmatpush1.bf16.xpose.msra.mxu0 0
    %176 = vmatprep.subr.bf16.mxu0 0
    %177 = vmatpush1.bf16.xpose.msra.mxu0 0
    %178 = vmatprep.subr.bf16.mxu0 0
    %179 = vmatpush1.bf16.xpose.msra.mxu0 0
    %180 = vmatprep.subr.bf16.mxu0 0
    %181 = vmatpush1.bf16.xpose.msra.mxu0 0
    %182 = vmatprep.subr.bf16.mxu0 0
    %183 = vmatpush1.bf16.xpose.msra.mxu0 0
    %184 = vmatprep.subr.bf16.mxu0 0
    %185 = vmatpush1.bf16.xpose.msra.mxu0 0
    %186 = vmatprep.mubr.bf16.mxu0 0
    %187 = vmatmul.mubr.bf16.gmra.mrb[0].mxu0 %v149
    %v188 = vpop.f32.mrb[0].mxu0
    %v189 = vadd.f32 0.0, %v188
    %v190 = vpop.f32.mrb[0].mxu0
    %v191 = vpop.f32.mrb[0].mxu0
    %v192 = vpop.f32.mrb[0].mxu0
    %193 = vdwg.mxu0
    %v194 = vsel %vm143, %v189, -1e+30
    %v195 = vsel %vm147, %v194, -inf
    %196 = vmax.xlane.f32.xlu0 %v195
    %v197 = vpop.xlane.xlu0 %196
    %v198 = vsub.f32 %v194, %v197
    %v199 = vmul.f32 %v198, 1.442695
    %v200 = vpow.pop %v199
    %v201 = vsel %vm147, %v200, 0.0
    %202 = vadd.xlane.f32.xlu0 %v201
    %v203 = vpop.xlane.xlu0 %202
    %v204 = vrcp.pop %v203
    %v205 = vmul.f32 %v200, %v204
    %v206 = vpack.c.bf16 %v205, %v205
    %207 = vrot.lane.b32.xlu0 %v138, 64
    %v208 = vpop.permute.xlu0 %207
    %v210 = vsel %vm147, %v206, 0
    %vm212 = vcmask 1043456
    %v214 = vsel %vm212, %v208, 0
    %216 = vmatprep.subr.bf16.mxu0 0
    %217 = vmatpush1.bf16.msra.mxu0 %v214
    %218 = vmatprep.subr.bf16.mxu0 0
    %219 = vmatpush1.bf16.msra.mxu0 0
    %220 = vmatprep.subr.bf16.mxu0 0
    %221 = vmatpush1.bf16.msra.mxu0 0
    %222 = vmatprep.subr.bf16.mxu0 0
    %223 = vmatpush1.bf16.msra.mxu0 0
    %224 = vmatprep.subr.bf16.mxu0 0
    %225 = vmatpush1.bf16.msra.mxu0 0
    %226 = vmatprep.subr.bf16.mxu0 0
    %227 = vmatpush1.bf16.msra.mxu0 0
    %228 = vmatprep.subr.bf16.mxu0 0
    %229 = vmatpush1.bf16.msra.mxu0 0
    %230 = vmatprep.subr.bf16.mxu0 0
    %231 = vmatpush1.bf16.msra.mxu0 0
    %232 = vmatprep.subr.bf16.mxu0 0
    %233 = vmatpush1.bf16.msra.mxu0 0
    %234 = vmatprep.subr.bf16.mxu0 0
    %235 = vmatpush1.bf16.msra.mxu0 0
    %236 = vmatprep.subr.bf16.mxu0 0
    %237 = vmatpush1.bf16.msra.mxu0 0
    %238 = vmatprep.subr.bf16.mxu0 0
    %239 = vmatpush1.bf16.msra.mxu0 0
    %240 = vmatprep.subr.bf16.mxu0 0
    %241 = vmatpush1.bf16.msra.mxu0 0
    %242 = vmatprep.subr.bf16.mxu0 0
    %243 = vmatpush1.bf16.msra.mxu0 0
    %244 = vmatprep.subr.bf16.mxu0 0
    %245 = vmatpush1.bf16.msra.mxu0 0
    %246 = vmatprep.subr.bf16.mxu0 0
    %247 = vmatpush1.bf16.msra.mxu0 0
    %248 = vmatprep.mubr.bf16.mxu0 0
    %249 = vmatmul.mubr.bf16.gmra.mrb[0].mxu0 %v210
    %v250 = vpop.f32.mrb[0].mxu0
    %v251 = vadd.f32 0.0, %v250
    %v252 = vpop.f32.mrb[0].mxu0
    %v253 = vpop.f32.mrb[0].mxu0
    %v254 = vpop.f32.mrb[0].mxu0
    %255 = vdwg.mxu0
    %256 = vrot.lane.b32.xlu0 %v138, 120
    %v257 = vpop.permute.xlu0 %256
    %258 = vrot.lane.b32.xlu0 %v138, 88
    %v259 = vpop.permute.xlu0 %258
    %v261 = vsel %vm147, %v257, 0
    %v264 = vsel %vm147, %v259, 0
    %266 = vmatprep.subr.bf16.mxu0 0
    %267 = vmatpush1.bf16.xpose.msra.mxu0 %v264
    %268 = vmatprep.subr.bf16.mxu0 0
    %269 = vmatpush1.bf16.xpose.msra.mxu0 0
    %270 = vmatprep.subr.bf16.mxu0 0
    %271 = vmatpush1.bf16.xpose.msra.mxu0 0
    %272 = vmatprep.subr.bf16.mxu0 0
    %273 = vmatpush1.bf16.xpose.msra.mxu0 0
    %274 = vmatprep.subr.bf16.mxu0 0
    %275 = vmatpush1.bf16.xpose.msra.mxu0 0
    %276 = vmatprep.subr.bf16.mxu0 0
    %277 = vmatpush1.bf16.xpose.msra.mxu0 0
    %278 = vmatprep.subr.bf16.mxu0 0
    %279 = vmatpush1.bf16.xpose.msra.mxu0 0
    %280 = vmatprep.subr.bf16.mxu0 0
    %281 = vmatpush1.bf16.xpose.msra.mxu0 0
    %282 = vmatprep.subr.bf16.mxu0 0
    %283 = vmatpush1.bf16.xpose.msra.mxu0 0
    %284 = vmatprep.subr.bf16.mxu0 0
    %285 = vmatpush1.bf16.xpose.msra.mxu0 0
    %286 = vmatprep.subr.bf16.mxu0 0
    %287 = vmatpush1.bf16.xpose.msra.mxu0 0
    %288 = vmatprep.subr.bf16.mxu0 0
    %289 = vmatpush1.bf16.xpose.msra.mxu0 0
    %290 = vmatprep.subr.bf16.mxu0 0
    %291 = vmatpush1.bf16.xpose.msra.mxu0 0
    %292 = vmatprep.subr.bf16.mxu0 0
    %293 = vmatpush1.bf16.xpose.msra.mxu0 0
    %294 = vmatprep.subr.bf16.mxu0 0
    %295 = vmatpush1.bf16.xpose.msra.mxu0 0
    %296 = vmatprep.subr.bf16.mxu0 0
    %297 = vmatpush1.bf16.xpose.msra.mxu0 0
    %298 = vmatprep.mubr.bf16.mxu0 0
    %299 = vmatmul.mubr.bf16.gmra.mrb[0].mxu0 %v261
    %v300 = vpop.f32.mrb[0].mxu0
    %v301 = vadd.f32 0.0, %v300
    %v302 = vpop.f32.mrb[0].mxu0
    %v303 = vpop.f32.mrb[0].mxu0
    %v304 = vpop.f32.mrb[0].mxu0
    %305 = vdwg.mxu0
    %v306 = vsel %vm143, %v301, -1e+30
    %v307 = vsel %vm147, %v306, -inf
    %308 = vmax.xlane.f32.xlu0 %v307
    %v309 = vpop.xlane.xlu0 %308
    %v310 = vsub.f32 %v306, %v309
    %v311 = vmul.f32 %v310, 1.442695
    %v312 = vpow.pop %v311
    %v313 = vsel %vm147, %v312, 0.0
    %314 = vadd.xlane.f32.xlu0 %v313
    %v315 = vpop.xlane.xlu0 %314
    %v316 = vrcp.pop %v315
    %v317 = vmul.f32 %v312, %v316
    %v318 = vpack.c.bf16 %v317, %v317
    %319 = vrot.lane.b32.xlu0 %v138, 56
    %v320 = vpop.permute.xlu0 %319
    %v322 = vsel %vm147, %v318, 0
    %v325 = vsel %vm212, %v320, 0
    %327 = vmatprep.subr.bf16.mxu0 0
    %328 = vmatpush1.bf16.msra.mxu0 %v325
    %329 = vmatprep.subr.bf16.mxu0 0
    %330 = vmatpush1.bf16.msra.mxu0 0
    %331 = vmatprep.subr.bf16.mxu0 0
    %332 = vmatpush1.bf16.msra.mxu0 0
    %333 = vmatprep.subr.bf16.mxu0 0
    %334 = vmatpush1.bf16.msra.mxu0 0
    %335 = vmatprep.subr.bf16.mxu0 0
    %336 = vmatpush1.bf16.msra.mxu0 0
    %337 = vmatprep.subr.bf16.mxu0 0
    %338 = vmatpush1.bf16.msra.mxu0 0
    %339 = vmatprep.subr.bf16.mxu0 0
    %340 = vmatpush1.bf16.msra.mxu0 0
    %341 = vmatprep.subr.bf16.mxu0 0
    %342 = vmatpush1.bf16.msra.mxu0 0
    %343 = vmatprep.subr.bf16.mxu0 0
    %344 = vmatpush1.bf16.msra.mxu0 0
    %345 = vmatprep.subr.bf16.mxu0 0
    %346 = vmatpush1.bf16.msra.mxu0 0
    %347 = vmatprep.subr.bf16.mxu0 0
    %348 = vmatpush1.bf16.msra.mxu0 0
    %349 = vmatprep.subr.bf16.mxu0 0
    %350 = vmatpush1.bf16.msra.mxu0 0
    %351 = vmatprep.subr.bf16.mxu0 0
    %352 = vmatpush1.bf16.msra.mxu0 0
    %353 = vmatprep.subr.bf16.mxu0 0
    %354 = vmatpush1.bf16.msra.mxu0 0
    %355 = vmatprep.subr.bf16.mxu0 0
    %356 = vmatpush1.bf16.msra.mxu0 0
    %357 = vmatprep.subr.bf16.mxu0 0
    %358 = vmatpush1.bf16.msra.mxu0 0
    %359 = vmatprep.mubr.bf16.mxu0 0
    %360 = vmatmul.mubr.bf16.gmra.mrb[0].mxu0 %v322
    %v361 = vpop.f32.mrb[0].mxu0
    %v362 = vadd.f32 0.0, %v361
    %v363 = vpop.f32.mrb[0].mxu0
    %v364 = vpop.f32.mrb[0].mxu0
    %v365 = vpop.f32.mrb[0].mxu0
    %366 = vdwg.mxu0
    %367 = vrot.lane.b32.xlu0 %v138, 112
    %v368 = vpop.permute.xlu0 %367
    %369 = vrot.lane.b32.xlu0 %v138, 80
    %v370 = vpop.permute.xlu0 %369
    %v372 = vsel %vm147, %v368, 0
    %v375 = vsel %vm147, %v370, 0
    %377 = vmatprep.subr.bf16.mxu0 0
    %378 = vmatpush1.bf16.xpose.msra.mxu0 %v375
    %379 = vmatprep.subr.bf16.mxu0 0
    %380 = vmatpush1.bf16.xpose.msra.mxu0 0
    %381 = vmatprep.subr.bf16.mxu0 0
    %382 = vmatpush1.bf16.xpose.msra.mxu0 0
    %383 = vmatprep.subr.bf16.mxu0 0
    %384 = vmatpush1.bf16.xpose.msra.mxu0 0
    %385 = vmatprep.subr.bf16.mxu0 0
    %386 = vmatpush1.bf16.xpose.msra.mxu0 0
    %387 = vmatprep.subr.bf16.mxu0 0
    %388 = vmatpush1.bf16.xpose.msra.mxu0 0
    %389 = vmatprep.subr.bf16.mxu0 0
    %390 = vmatpush1.bf16.xpose.msra.mxu0 0
    %391 = vmatprep.subr.bf16.mxu0 0
    %392 = vmatpush1.bf16.xpose.msra.mxu0 0
    %393 = vmatprep.subr.bf16.mxu0 0
    %394 = vmatpush1.bf16.xpose.msra.mxu0 0
    %395 = vmatprep.subr.bf16.mxu0 0
    %396 = vmatpush1.bf16.xpose.msra.mxu0 0
    %397 = vmatprep.subr.bf16.mxu0 0
    %398 = vmatpush1.bf16.xpose.msra.mxu0 0
    %399 = vmatprep.subr.bf16.mxu0 0
    %400 = vmatpush1.bf16.xpose.msra.mxu0 0
    %401 = vmatprep.subr.bf16.mxu0 0
    %402 = vmatpush1.bf16.xpose.msra.mxu0 0
    %403 = vmatprep.subr.bf16.mxu0 0
    %404 = vmatpush1.bf16.xpose.msra.mxu0 0
    %405 = vmatprep.subr.bf16.mxu0 0
    %406 = vmatpush1.bf16.xpose.msra.mxu0 0
    %407 = vmatprep.subr.bf16.mxu0 0
    %408 = vmatpush1.bf16.xpose.msra.mxu0 0
    %409 = vmatprep.mubr.bf16.mxu0 0
    %410 = vmatmul.mubr.bf16.gmra.mrb[0].mxu0 %v372
    %v411 = vpop.f32.mrb[0].mxu0
    %v412 = vadd.f32 0.0, %v411
    %v413 = vpop.f32.mrb[0].mxu0
    %v414 = vpop.f32.mrb[0].mxu0
    %v415 = vpop.f32.mrb[0].mxu0
    %416 = vdwg.mxu0
    %v417 = vsel %vm143, %v412, -1e+30
    %v418 = vsel %vm147, %v417, -inf
    %419 = vmax.xlane.f32.xlu0 %v418
    %v420 = vpop.xlane.xlu0 %419
    %v421 = vsub.f32 %v417, %v420
    %v422 = vmul.f32 %v421, 1.442695
    %v423 = vpow.pop %v422
    %v424 = vsel %vm147, %v423, 0.0
    %425 = vadd.xlane.f32.xlu0 %v424
    %v426 = vpop.xlane.xlu0 %425
    %v427 = vrcp.pop %v426
    %v428 = vmul.f32 %v423, %v427
    %v429 = vpack.c.bf16 %v428, %v428
    %430 = vrot.lane.b32.xlu0 %v138, 48
    %v431 = vpop.permute.xlu0 %430
    %v433 = vsel %vm147, %v429, 0
    %v436 = vsel %vm212, %v431, 0
    %438 = vmatprep.subr.bf16.mxu0 0
    %439 = vmatpush1.bf16.msra.mxu0 %v436
    %440 = vmatprep.subr.bf16.mxu0 0
    %441 = vmatpush1.bf16.msra.mxu0 0
    %442 = vmatprep.subr.bf16.mxu0 0
    %443 = vmatpush1.bf16.msra.mxu0 0
    %444 = vmatprep.subr.bf16.mxu0 0
    %445 = vmatpush1.bf16.msra.mxu0 0
    %446 = vmatprep.subr.bf16.mxu0 0
    %447 = vmatpush1.bf16.msra.mxu0 0
    %448 = vmatprep.subr.bf16.mxu0 0
    %449 = vmatpush1.bf16.msra.mxu0 0
    %450 = vmatprep.subr.bf16.mxu0 0
    %451 = vmatpush1.bf16.msra.mxu0 0
    %452 = vmatprep.subr.bf16.mxu0 0
    %453 = vmatpush1.bf16.msra.mxu0 0
    %454 = vmatprep.subr.bf16.mxu0 0
    %455 = vmatpush1.bf16.msra.mxu0 0
    %456 = vmatprep.subr.bf16.mxu0 0
    %457 = vmatpush1.bf16.msra.mxu0 0
    %458 = vmatprep.subr.bf16.mxu0 0
    %459 = vmatpush1.bf16.msra.mxu0 0
    %460 = vmatprep.subr.bf16.mxu0 0
    %461 = vmatpush1.bf16.msra.mxu0 0
    %462 = vmatprep.subr.bf16.mxu0 0
    %463 = vmatpush1.bf16.msra.mxu0 0
    %464 = vmatprep.subr.bf16.mxu0 0
    %465 = vmatpush1.bf16.msra.mxu0 0
    %466 = vmatprep.subr.bf16.mxu0 0
    %467 = vmatpush1.bf16.msra.mxu0 0
    %468 = vmatprep.subr.bf16.mxu0 0
    %469 = vmatpush1.bf16.msra.mxu0 0
    %470 = vmatprep.mubr.bf16.mxu0 0
    %471 = vmatmul.mubr.bf16.gmra.mrb[0].mxu0 %v433
    %v472 = vpop.f32.mrb[0].mxu0
    %v473 = vadd.f32 0.0, %v472
    %v474 = vpop.f32.mrb[0].mxu0
    %v475 = vpop.f32.mrb[0].mxu0
    %v476 = vpop.f32.mrb[0].mxu0
    %477 = vdwg.mxu0
    %478 = vrot.lane.b32.xlu0 %v138, 104
    %v479 = vpop.permute.xlu0 %478
    %480 = vrot.lane.b32.xlu0 %v138, 72
    %v481 = vpop.permute.xlu0 %480
    %v483 = vsel %vm147, %v479, 0
    %v486 = vsel %vm147, %v481, 0
    %488 = vmatprep.subr.bf16.mxu0 0
    %489 = vmatpush1.bf16.xpose.msra.mxu0 %v486
    %490 = vmatprep.subr.bf16.mxu0 0
    %491 = vmatpush1.bf16.xpose.msra.mxu0 0
    %492 = vmatprep.subr.bf16.mxu0 0
    %493 = vmatpush1.bf16.xpose.msra.mxu0 0
    %494 = vmatprep.subr.bf16.mxu0 0
    %495 = vmatpush1.bf16.xpose.msra.mxu0 0
    %496 = vmatprep.subr.bf16.mxu0 0
    %497 = vmatpush1.bf16.xpose.msra.mxu0 0
    %498 = vmatprep.subr.bf16.mxu0 0
    %499 = vmatpush1.bf16.xpose.msra.mxu0 0
    %500 = vmatprep.subr.bf16.mxu0 0
    %501 = vmatpush1.bf16.xpose.msra.mxu0 0
    %502 = vmatprep.subr.bf16.mxu0 0
    %503 = vmatpush1.bf16.xpose.msra.mxu0 0
    %504 = vmatprep.subr.bf16.mxu0 0
    %505 = vmatpush1.bf16.xpose.msra.mxu0 0
    %506 = vmatprep.subr.bf16.mxu0 0
    %507 = vmatpush1.bf16.xpose.msra.mxu0 0
    %508 = vmatprep.subr.bf16.mxu0 0
    %509 = vmatpush1.bf16.xpose.msra.mxu0 0
    %510 = vmatprep.subr.bf16.mxu0 0
    %511 = vmatpush1.bf16.xpose.msra.mxu0 0
    %512 = vmatprep.subr.bf16.mxu0 0
    %513 = vmatpush1.bf16.xpose.msra.mxu0 0
    %514 = vmatprep.subr.bf16.mxu0 0
    %515 = vmatpush1.bf16.xpose.msra.mxu0 0
    %516 = vmatprep.subr.bf16.mxu0 0
    %517 = vmatpush1.bf16.xpose.msra.mxu0 0
    %518 = vmatprep.subr.bf16.mxu0 0
    %519 = vmatpush1.bf16.xpose.msra.mxu0 0
    %520 = vmatprep.mubr.bf16.mxu0 0
    %521 = vmatmul.mubr.bf16.gmra.mrb[0].mxu0 %v483
    %v522 = vpop.f32.mrb[0].mxu0
    %v523 = vadd.f32 0.0, %v522
    %v524 = vpop.f32.mrb[0].mxu0
    %v525 = vpop.f32.mrb[0].mxu0
    %v526 = vpop.f32.mrb[0].mxu0
    %527 = vdwg.mxu0
    %v528 = vsel %vm143, %v523, -1e+30
    %v529 = vsel %vm147, %v528, -inf
    %530 = vmax.xlane.f32.xlu0 %v529
    %v531 = vpop.xlane.xlu0 %530
    %v532 = vsub.f32 %v528, %v531
    %v533 = vmul.f32 %v532, 1.442695
    %v534 = vpow.pop %v533
    %v535 = vsel %vm147, %v534, 0.0
    %536 = vadd.xlane.f32.xlu0 %v535
    %v537 = vpop.xlane.xlu0 %536
    %v538 = vrcp.pop %v537
    %v539 = vmul.f32 %v534, %v538
    %v540 = vpack.c.bf16 %v539, %v539
    %541 = vrot.lane.b32.xlu0 %v138, 40
    %v542 = vpop.permute.xlu0 %541
    %v544 = vsel %vm147, %v540, 0
    %v547 = vsel %vm212, %v542, 0
    %549 = vmatprep.subr.bf16.mxu0 0
    %550 = vmatpush1.bf16.msra.mxu0 %v547
    %551 = vmatprep.subr.bf16.mxu0 0
    %552 = vmatpush1.bf16.msra.mxu0 0
    %553 = vmatprep.subr.bf16.mxu0 0
    %554 = vmatpush1.bf16.msra.mxu0 0
    %555 = vmatprep.subr.bf16.mxu0 0
    %556 = vmatpush1.bf16.msra.mxu0 0
    %557 = vmatprep.subr.bf16.mxu0 0
    %558 = vmatpush1.bf16.msra.mxu0 0
    %559 = vmatprep.subr.bf16.mxu0 0
    %560 = vmatpush1.bf16.msra.mxu0 0
    %561 = vmatprep.subr.bf16.mxu0 0
    %562 = vmatpush1.bf16.msra.mxu0 0
    %563 = vmatprep.subr.bf16.mxu0 0
    %564 = vmatpush1.bf16.msra.mxu0 0
    %565 = vmatprep.subr.bf16.mxu0 0
    %566 = vmatpush1.bf16.msra.mxu0 0
    %567 = vmatprep.subr.bf16.mxu0 0
    %568 = vmatpush1.bf16.msra.mxu0 0
    %569 = vmatprep.subr.bf16.mxu0 0
    %570 = vmatpush1.bf16.msra.mxu0 0
    %571 = vmatprep.subr.bf16.mxu0 0
    %572 = vmatpush1.bf16.msra.mxu0 0
    %573 = vmatprep.subr.bf16.mxu0 0
    %574 = vmatpush1.bf16.msra.mxu0 0
    %575 = vmatprep.subr.bf16.mxu0 0
    %576 = vmatpush1.bf16.msra.mxu0 0
    %577 = vmatprep.subr.bf16.mxu0 0
    %578 = vmatpush1.bf16.msra.mxu0 0
    %579 = vmatprep.subr.bf16.mxu0 0
    %580 = vmatpush1.bf16.msra.mxu0 0
    %581 = vmatprep.mubr.bf16.mxu0 0
    %582 = vmatmul.mubr.bf16.gmra.mrb[0].mxu0 %v544
    %v583 = vpop.f32.mrb[0].mxu0
    %v584 = vadd.f32 0.0, %v583
    %v585 = vpop.f32.mrb[0].mxu0
    %v586 = vpop.f32.mrb[0].mxu0
    %v587 = vpop.f32.mrb[0].mxu0
    %588 = vdwg.mxu0
    %590 = vrot.lane.b32.xlu0 %v362, 8
    %v591 = vpop.permute.xlu0 %590
    %594 = vrot.lane.b32.xlu0 %v473, 16
    %v595 = vpop.permute.xlu0 %594
    %598 = vrot.lane.b32.xlu0 %v584, 24
    %v599 = vpop.permute.xlu0 %598
    %v601 = vsel %vm147, %v251, %v591
    %vm602 = vcmask 130048
    %v603 = vsel %vm602, %v601, %v595
    %vm604 = vcmask 195584
    %v605 = vsel %vm604, %v603, %v599
    %v606 = vrot.slane %v138, 4
    %607 = vrot.lane.b32.xlu0 %v606, 96
    %v608 = vpop.permute.xlu0 %607
    %v610 = vsel %vm147, %v606, 0
    %v613 = vsel %vm147, %v608, 0
    %615 = vmatprep.subr.bf16.mxu0 0
    %616 = vmatpush1.bf16.xpose.msra.mxu0 %v613
    %617 = vmatprep.subr.bf16.mxu0 0
    %618 = vmatpush1.bf16.xpose.msra.mxu0 0
    %619 = vmatprep.subr.bf16.mxu0 0
    %620 = vmatpush1.bf16.xpose.msra.mxu0 0
    %621 = vmatprep.subr.bf16.mxu0 0
    %622 = vmatpush1.bf16.xpose.msra.mxu0 0
    %623 = vmatprep.subr.bf16.mxu0 0
    %624 = vmatpush1.bf16.xpose.msra.mxu0 0
    %625 = vmatprep.subr.bf16.mxu0 0
    %626 = vmatpush1.bf16.xpose.msra.mxu0 0
    %627 = vmatprep.subr.bf16.mxu0 0
    %628 = vmatpush1.bf16.xpose.msra.mxu0 0
    %629 = vmatprep.subr.bf16.mxu0 0
    %630 = vmatpush1.bf16.xpose.msra.mxu0 0
    %631 = vmatprep.subr.bf16.mxu0 0
    %632 = vmatpush1.bf16.xpose.msra.mxu0 0
    %633 = vmatprep.subr.bf16.mxu0 0
    %634 = vmatpush1.bf16.xpose.msra.mxu0 0
    %635 = vmatprep.subr.bf16.mxu0 0
    %636 = vmatpush1.bf16.xpose.msra.mxu0 0
    %637 = vmatprep.subr.bf16.mxu0 0
    %638 = vmatpush1.bf16.xpose.msra.mxu0 0
    %639 = vmatprep.subr.bf16.mxu0 0
    %640 = vmatpush1.bf16.xpose.msra.mxu0 0
    %641 = vmatprep.subr.bf16.mxu0 0
    %642 = vmatpush1.bf16.xpose.msra.mxu0 0
    %643 = vmatprep.subr.bf16.mxu0 0
    %644 = vmatpush1.bf16.xpose.msra.mxu0 0
    %645 = vmatprep.subr.bf16.mxu0 0
    %646 = vmatpush1.bf16.xpose.msra.mxu0 0
    %647 = vmatprep.mubr.bf16.mxu0 0
    %648 = vmatmul.mubr.bf16.gmra.mrb[0].mxu0 %v610
    %v649 = vpop.f32.mrb[0].mxu0
    %v650 = vadd.f32 0.0, %v649
    %v651 = vpop.f32.mrb[0].mxu0
    %v652 = vpop.f32.mrb[0].mxu0
    %v653 = vpop.f32.mrb[0].mxu0
    %654 = vdwg.mxu0
    %v655 = vsel %vm143, %v650, -1e+30
    %v656 = vsel %vm147, %v655, -inf
    %657 = vmax.xlane.f32.xlu0 %v656
    %v658 = vpop.xlane.xlu0 %657
    %v659 = vsub.f32 %v655, %v658
    %v660 = vmul.f32 %v659, 1.442695
    %v661 = vpow.pop %v660
    %v662 = vsel %vm147, %v661, 0.0
    %663 = vadd.xlane.f32.xlu0 %v662
    %v664 = vpop.xlane.xlu0 %663
    %v665 = vrcp.pop %v664
    %v666 = vmul.f32 %v661, %v665
    %v667 = vpack.c.bf16 %v666, %v666
    %668 = vrot.lane.b32.xlu0 %v606, 64
    %v669 = vpop.permute.xlu0 %668
    %v671 = vsel %vm147, %v667, 0
    %v674 = vsel %vm212, %v669, 0
    %676 = vmatprep.subr.bf16.mxu0 0
    %677 = vmatpush1.bf16.msra.mxu0 %v674
    %678 = vmatprep.subr.bf16.mxu0 0
    %679 = vmatpush1.bf16.msra.mxu0 0
    %680 = vmatprep.subr.bf16.mxu0 0
    %681 = vmatpush1.bf16.msra.mxu0 0
    %682 = vmatprep.subr.bf16.mxu0 0
    %683 = vmatpush1.bf16.msra.mxu0 0
    %684 = vmatprep.subr.bf16.mxu0 0
    %685 = vmatpush1.bf16.msra.mxu0 0
    %686 = vmatprep.subr.bf16.mxu0 0
    %687 = vmatpush1.bf16.msra.mxu0 0
    %688 = vmatprep.subr.bf16.mxu0 0
    %689 = vmatpush1.bf16.msra.mxu0 0
    %690 = vmatprep.subr.bf16.mxu0 0
    %691 = vmatpush1.bf16.msra.mxu0 0
    %692 = vmatprep.subr.bf16.mxu0 0
    %693 = vmatpush1.bf16.msra.mxu0 0
    %694 = vmatprep.subr.bf16.mxu0 0
    %695 = vmatpush1.bf16.msra.mxu0 0
    %696 = vmatprep.subr.bf16.mxu0 0
    %697 = vmatpush1.bf16.msra.mxu0 0
    %698 = vmatprep.subr.bf16.mxu0 0
    %699 = vmatpush1.bf16.msra.mxu0 0
    %700 = vmatprep.subr.bf16.mxu0 0
    %701 = vmatpush1.bf16.msra.mxu0 0
    %702 = vmatprep.subr.bf16.mxu0 0
    %703 = vmatpush1.bf16.msra.mxu0 0
    %704 = vmatprep.subr.bf16.mxu0 0
    %705 = vmatpush1.bf16.msra.mxu0 0
    %706 = vmatprep.subr.bf16.mxu0 0
    %707 = vmatpush1.bf16.msra.mxu0 0
    %708 = vmatprep.mubr.bf16.mxu0 0
    %709 = vmatmul.mubr.bf16.gmra.mrb[0].mxu0 %v671
    %v710 = vpop.f32.mrb[0].mxu0
    %v711 = vadd.f32 0.0, %v710
    %v712 = vpop.f32.mrb[0].mxu0
    %v713 = vpop.f32.mrb[0].mxu0
    %v714 = vpop.f32.mrb[0].mxu0
    %715 = vdwg.mxu0
    %716 = vrot.lane.b32.xlu0 %v606, 120
    %v717 = vpop.permute.xlu0 %716
    %718 = vrot.lane.b32.xlu0 %v606, 88
    %v719 = vpop.permute.xlu0 %718
    %v721 = vsel %vm147, %v717, 0
    %v724 = vsel %vm147, %v719, 0
    %726 = vmatprep.subr.bf16.mxu0 0
    %727 = vmatpush1.bf16.xpose.msra.mxu0 %v724
    %728 = vmatprep.subr.bf16.mxu0 0
    %729 = vmatpush1.bf16.xpose.msra.mxu0 0
    %730 = vmatprep.subr.bf16.mxu0 0
    %731 = vmatpush1.bf16.xpose.msra.mxu0 0
    %732 = vmatprep.subr.bf16.mxu0 0
    %733 = vmatpush1.bf16.xpose.msra.mxu0 0
    %734 = vmatprep.subr.bf16.mxu0 0
    %735 = vmatpush1.bf16.xpose.msra.mxu0 0
    %736 = vmatprep.subr.bf16.mxu0 0
    %737 = vmatpush1.bf16.xpose.msra.mxu0 0
    %738 = vmatprep.subr.bf16.mxu0 0
    %739 = vmatpush1.bf16.xpose.msra.mxu0 0
    %740 = vmatprep.subr.bf16.mxu0 0
    %741 = vmatpush1.bf16.xpose.msra.mxu0 0
    %742 = vmatprep.subr.bf16.mxu0 0
    %743 = vmatpush1.bf16.xpose.msra.mxu0 0
    %744 = vmatprep.subr.bf16.mxu0 0
    %745 = vmatpush1.bf16.xpose.msra.mxu0 0
    %746 = vmatprep.subr.bf16.mxu0 0
    %747 = vmatpush1.bf16.xpose.msra.mxu0 0
    %748 = vmatprep.subr.bf16.mxu0 0
    %749 = vmatpush1.bf16.xpose.msra.mxu0 0
    %750 = vmatprep.subr.bf16.mxu0 0
    %751 = vmatpush1.bf16.xpose.msra.mxu0 0
    %752 = vmatprep.subr.bf16.mxu0 0
    %753 = vmatpush1.bf16.xpose.msra.mxu0 0
    %754 = vmatprep.subr.bf16.mxu0 0
    %755 = vmatpush1.bf16.xpose.msra.mxu0 0
    %756 = vmatprep.subr.bf16.mxu0 0
    %757 = vmatpush1.bf16.xpose.msra.mxu0 0
    %758 = vmatprep.mubr.bf16.mxu0 0
    %759 = vmatmul.mubr.bf16.gmra.mrb[0].mxu0 %v721
    %v760 = vpop.f32.mrb[0].mxu0
    %v761 = vadd.f32 0.0, %v760
    %v762 = vpop.f32.mrb[0].mxu0
    %v763 = vpop.f32.mrb[0].mxu0
    %v764 = vpop.f32.mrb[0].mxu0
    %765 = vdwg.mxu0
    %v766 = vsel %vm143, %v761, -1e+30
    %v767 = vsel %vm147, %v766, -inf
    %768 = vmax.xlane.f32.xlu0 %v767
    %v769 = vpop.xlane.xlu0 %768
    %v770 = vsub.f32 %v766, %v769
    %v771 = vmul.f32 %v770, 1.442695
    %v772 = vpow.pop %v771
    %v773 = vsel %vm147, %v772, 0.0
    %774 = vadd.xlane.f32.xlu0 %v773
    %v775 = vpop.xlane.xlu0 %774
    %v776 = vrcp.pop %v775
    %v777 = vmul.f32 %v772, %v776
    %v778 = vpack.c.bf16 %v777, %v777
    %779 = vrot.lane.b32.xlu0 %v606, 56
    %v780 = vpop.permute.xlu0 %779
    %v782 = vsel %vm147, %v778, 0
    %v785 = vsel %vm212, %v780, 0
    %787 = vmatprep.subr.bf16.mxu0 0
    %788 = vmatpush1.bf16.msra.mxu0 %v785
    %789 = vmatprep.subr.bf16.mxu0 0
    %790 = vmatpush1.bf16.msra.mxu0 0
    %791 = vmatprep.subr.bf16.mxu0 0
    %792 = vmatpush1.bf16.msra.mxu0 0
    %793 = vmatprep.subr.bf16.mxu0 0
    %794 = vmatpush1.bf16.msra.mxu0 0
    %795 = vmatprep.subr.bf16.mxu0 0
    %796 = vmatpush1.bf16.msra.mxu0 0
    %797 = vmatprep.subr.bf16.mxu0 0
    %798 = vmatpush1.bf16.msra.mxu0 0
    %799 = vmatprep.subr.bf16.mxu0 0
    %800 = vmatpush1.bf16.msra.mxu0 0
    %801 = vmatprep.subr.bf16.mxu0 0
    %802 = vmatpush1.bf16.msra.mxu0 0
    %803 = vmatprep.subr.bf16.mxu0 0
    %804 = vmatpush1.bf16.msra.mxu0 0
    %805 = vmatprep.subr.bf16.mxu0 0
    %806 = vmatpush1.bf16.msra.mxu0 0
    %807 = vmatprep.subr.bf16.mxu0 0
    %808 = vmatpush1.bf16.msra.mxu0 0
    %809 = vmatprep.subr.bf16.mxu0 0
    %810 = vmatpush1.bf16.msra.mxu0 0
    %811 = vmatprep.subr.bf16.mxu0 0
    %812 = vmatpush1.bf16.msra.mxu0 0
    %813 = vmatprep.subr.bf16.mxu0 0
    %814 = vmatpush1.bf16.msra.mxu0 0
    %815 = vmatprep.subr.bf16.mxu0 0
    %816 = vmatpush1.bf16.msra.mxu0 0
    %817 = vmatprep.subr.bf16.mxu0 0
    %818 = vmatpush1.bf16.msra.mxu0 0
    %819 = vmatprep.mubr.bf16.mxu0 0
    %820 = vmatmul.mubr.bf16.gmra.mrb[0].mxu0 %v782
    %v821 = vpop.f32.mrb[0].mxu0
    %v822 = vadd.f32 0.0, %v821
    %v823 = vpop.f32.mrb[0].mxu0
    %v824 = vpop.f32.mrb[0].mxu0
    %v825 = vpop.f32.mrb[0].mxu0
    %826 = vdwg.mxu0
    %827 = vrot.lane.b32.xlu0 %v606, 112
    %v828 = vpop.permute.xlu0 %827
    %829 = vrot.lane.b32.xlu0 %v606, 80
    %v830 = vpop.permute.xlu0 %829
    %v832 = vsel %vm147, %v828, 0
    %v835 = vsel %vm147, %v830, 0
    %837 = vmatprep.subr.bf16.mxu0 0
    %838 = vmatpush1.bf16.xpose.msra.mxu0 %v835
    %839 = vmatprep.subr.bf16.mxu0 0
    %840 = vmatpush1.bf16.xpose.msra.mxu0 0
    %841 = vmatprep.subr.bf16.mxu0 0
    %842 = vmatpush1.bf16.xpose.msra.mxu0 0
    %843 = vmatprep.subr.bf16.mxu0 0
    %844 = vmatpush1.bf16.xpose.msra.mxu0 0
    %845 = vmatprep.subr.bf16.mxu0 0
    %846 = vmatpush1.bf16.xpose.msra.mxu0 0
    %847 = vmatprep.subr.bf16.mxu0 0
    %848 = vmatpush1.bf16.xpose.msra.mxu0 0
    %849 = vmatprep.subr.bf16.mxu0 0
    %850 = vmatpush1.bf16.xpose.msra.mxu0 0
    %851 = vmatprep.subr.bf16.mxu0 0
    %852 = vmatpush1.bf16.xpose.msra.mxu0 0
    %853 = vmatprep.subr.bf16.mxu0 0
    %854 = vmatpush1.bf16.xpose.msra.mxu0 0
    %855 = vmatprep.subr.bf16.mxu0 0
    %856 = vmatpush1.bf16.xpose.msra.mxu0 0
    %857 = vmatprep.subr.bf16.mxu0 0
    %858 = vmatpush1.bf16.xpose.msra.mxu0 0
    %859 = vmatprep.subr.bf16.mxu0 0
    %860 = vmatpush1.bf16.xpose.msra.mxu0 0
    %861 = vmatprep.subr.bf16.mxu0 0
    %862 = vmatpush1.bf16.xpose.msra.mxu0 0
    %863 = vmatprep.subr.bf16.mxu0 0
    %864 = vmatpush1.bf16.xpose.msra.mxu0 0
    %865 = vmatprep.subr.bf16.mxu0 0
    %866 = vmatpush1.bf16.xpose.msra.mxu0 0
    %867 = vmatprep.subr.bf16.mxu0 0
    %868 = vmatpush1.bf16.xpose.msra.mxu0 0
    %869 = vmatprep.mubr.bf16.mxu0 0
    %870 = vmatmul.mubr.bf16.gmra.mrb[0].mxu0 %v832
    %v871 = vpop.f32.mrb[0].mxu0
    %v872 = vadd.f32 0.0, %v871
    %v873 = vpop.f32.mrb[0].mxu0
    %v874 = vpop.f32.mrb[0].mxu0
    %v875 = vpop.f32.mrb[0].mxu0
    %876 = vdwg.mxu0
    %v877 = vsel %vm143, %v872, -1e+30
    %v878 = vsel %vm147, %v877, -inf
    %879 = vmax.xlane.f32.xlu0 %v878
    %v880 = vpop.xlane.xlu0 %879
    %v881 = vsub.f32 %v877, %v880
    %v882 = vmul.f32 %v881, 1.442695
    %v883 = vpow.pop %v882
    %v884 = vsel %vm147, %v883, 0.0
    %885 = vadd.xlane.f32.xlu0 %v884
    %v886 = vpop.xlane.xlu0 %885
    %v887 = vrcp.pop %v886
    %v888 = vmul.f32 %v883, %v887
    %v889 = vpack.c.bf16 %v888, %v888
    %890 = vrot.lane.b32.xlu0 %v606, 48
    %v891 = vpop.permute.xlu0 %890
    %v893 = vsel %vm147, %v889, 0
    %v896 = vsel %vm212, %v891, 0
    %898 = vmatprep.subr.bf16.mxu0 0
    %899 = vmatpush1.bf16.msra.mxu0 %v896
    %900 = vmatprep.subr.bf16.mxu0 0
    %901 = vmatpush1.bf16.msra.mxu0 0
    %902 = vmatprep.subr.bf16.mxu0 0
    %903 = vmatpush1.bf16.msra.mxu0 0
    %904 = vmatprep.subr.bf16.mxu0 0
    %905 = vmatpush1.bf16.msra.mxu0 0
    %906 = vmatprep.subr.bf16.mxu0 0
    %907 = vmatpush1.bf16.msra.mxu0 0
    %908 = vmatprep.subr.bf16.mxu0 0
    %909 = vmatpush1.bf16.msra.mxu0 0
    %910 = vmatprep.subr.bf16.mxu0 0
    %911 = vmatpush1.bf16.msra.mxu0 0
    %912 = vmatprep.subr.bf16.mxu0 0
    %913 = vmatpush1.bf16.msra.mxu0 0
    %914 = vmatprep.subr.bf16.mxu0 0
    %915 = vmatpush1.bf16.msra.mxu0 0
    %916 = vmatprep.subr.bf16.mxu0 0
    %917 = vmatpush1.bf16.msra.mxu0 0
    %918 = vmatprep.subr.bf16.mxu0 0
    %919 = vmatpush1.bf16.msra.mxu0 0
    %920 = vmatprep.subr.bf16.mxu0 0
    %921 = vmatpush1.bf16.msra.mxu0 0
    %922 = vmatprep.subr.bf16.mxu0 0
    %923 = vmatpush1.bf16.msra.mxu0 0
    %924 = vmatprep.subr.bf16.mxu0 0
    %925 = vmatpush1.bf16.msra.mxu0 0
    %926 = vmatprep.subr.bf16.mxu0 0
    %927 = vmatpush1.bf16.msra.mxu0 0
    %928 = vmatprep.subr.bf16.mxu0 0
    %929 = vmatpush1.bf16.msra.mxu0 0
    %930 = vmatprep.mubr.bf16.mxu0 0
    %931 = vmatmul.mubr.bf16.gmra.mrb[0].mxu0 %v893
    %v932 = vpop.f32.mrb[0].mxu0
    %v933 = vadd.f32 0.0, %v932
    %v934 = vpop.f32.mrb[0].mxu0
    %v935 = vpop.f32.mrb[0].mxu0
    %v936 = vpop.f32.mrb[0].mxu0
    %937 = vdwg.mxu0
    %938 = vrot.lane.b32.xlu0 %v606, 104
    %v939 = vpop.permute.xlu0 %938
    %940 = vrot.lane.b32.xlu0 %v606, 72
    %v941 = vpop.permute.xlu0 %940
    %v943 = vsel %vm147, %v939, 0
    %v946 = vsel %vm147, %v941, 0
    %948 = vmatprep.subr.bf16.mxu0 0
    %949 = vmatpush1.bf16.xpose.msra.mxu0 %v946
    %950 = vmatprep.subr.bf16.mxu0 0
    %951 = vmatpush1.bf16.xpose.msra.mxu0 0
    %952 = vmatprep.subr.bf16.mxu0 0
    %953 = vmatpush1.bf16.xpose.msra.mxu0 0
    %954 = vmatprep.subr.bf16.mxu0 0
    %955 = vmatpush1.bf16.xpose.msra.mxu0 0
    %956 = vmatprep.subr.bf16.mxu0 0
    %957 = vmatpush1.bf16.xpose.msra.mxu0 0
    %958 = vmatprep.subr.bf16.mxu0 0
    %959 = vmatpush1.bf16.xpose.msra.mxu0 0
    %960 = vmatprep.subr.bf16.mxu0 0
    %961 = vmatpush1.bf16.xpose.msra.mxu0 0
    %962 = vmatprep.subr.bf16.mxu0 0
    %963 = vmatpush1.bf16.xpose.msra.mxu0 0
    %964 = vmatprep.subr.bf16.mxu0 0
    %965 = vmatpush1.bf16.xpose.msra.mxu0 0
    %966 = vmatprep.subr.bf16.mxu0 0
    %967 = vmatpush1.bf16.xpose.msra.mxu0 0
    %968 = vmatprep.subr.bf16.mxu0 0
    %969 = vmatpush1.bf16.xpose.msra.mxu0 0
    %970 = vmatprep.subr.bf16.mxu0 0
    %971 = vmatpush1.bf16.xpose.msra.mxu0 0
    %972 = vmatprep.subr.bf16.mxu0 0
    %973 = vmatpush1.bf16.xpose.msra.mxu0 0
    %974 = vmatprep.subr.bf16.mxu0 0
    %975 = vmatpush1.bf16.xpose.msra.mxu0 0
    %976 = vmatprep.subr.bf16.mxu0 0
    %977 = vmatpush1.bf16.xpose.msra.mxu0 0
    %978 = vmatprep.subr.bf16.mxu0 0
    %979 = vmatpush1.bf16.xpose.msra.mxu0 0
    %980 = vmatprep.mubr.bf16.mxu0 0
    %981 = vmatmul.mubr.bf16.gmra.mrb[0].mxu0 %v943
    %v982 = vpop.f32.mrb[0].mxu0
    %v983 = vadd.f32 0.0, %v982
    %v984 = vpop.f32.mrb[0].mxu0
    %v985 = vpop.f32.mrb[0].mxu0
    %v986 = vpop.f32.mrb[0].mxu0
    %987 = vdwg.mxu0
    %v988 = vsel %vm143, %v983, -1e+30
    %v989 = vsel %vm147, %v988, -inf
    %990 = vmax.xlane.f32.xlu0 %v989
    %v991 = vpop.xlane.xlu0 %990
    %v992 = vsub.f32 %v988, %v991
    %v993 = vmul.f32 %v992, 1.442695
    %v994 = vpow.pop %v993
    %v995 = vsel %vm147, %v994, 0.0
    %996 = vadd.xlane.f32.xlu0 %v995
    %v997 = vpop.xlane.xlu0 %996
    %v998 = vrcp.pop %v997
    %v999 = vmul.f32 %v994, %v998
    %v1000 = vpack.c.bf16 %v999, %v999
    %1001 = vrot.lane.b32.xlu0 %v606, 40
    %v1002 = vpop.permute.xlu0 %1001
    %v1004 = vsel %vm147, %v1000, 0
    %v1007 = vsel %vm212, %v1002, 0
    %1009 = vmatprep.subr.bf16.mxu0 0
    %1010 = vmatpush1.bf16.msra.mxu0 %v1007
    %1011 = vmatprep.subr.bf16.mxu0 0
    %1012 = vmatpush1.bf16.msra.mxu0 0
    %1013 = vmatprep.subr.bf16.mxu0 0
    %1014 = vmatpush1.bf16.msra.mxu0 0
    %1015 = vmatprep.subr.bf16.mxu0 0
    %1016 = vmatpush1.bf16.msra.mxu0 0
    %1017 = vmatprep.subr.bf16.mxu0 0
    %1018 = vmatpush1.bf16.msra.mxu0 0
    %1019 = vmatprep.subr.bf16.mxu0 0
    %1020 = vmatpush1.bf16.msra.mxu0 0
    %1021 = vmatprep.subr.bf16.mxu0 0
    %1022 = vmatpush1.bf16.msra.mxu0 0
    %1023 = vmatprep.subr.bf16.mxu0 0
    %1024 = vmatpush1.bf16.msra.mxu0 0
    %1025 = vmatprep.subr.bf16.mxu0 0
    %1026 = vmatpush1.bf16.msra.mxu0 0
    %1027 = vmatprep.subr.bf16.mxu0 0
    %1028 = vmatpush1.bf16.msra.mxu0 0
    %1029 = vmatprep.subr.bf16.mxu0 0
    %1030 = vmatpush1.bf16.msra.mxu0 0
    %1031 = vmatprep.subr.bf16.mxu0 0
    %1032 = vmatpush1.bf16.msra.mxu0 0
    %1033 = vmatprep.subr.bf16.mxu0 0
    %1034 = vmatpush1.bf16.msra.mxu0 0
    %1035 = vmatprep.subr.bf16.mxu0 0
    %1036 = vmatpush1.bf16.msra.mxu0 0
    %1037 = vmatprep.subr.bf16.mxu0 0
    %1038 = vmatpush1.bf16.msra.mxu0 0
    %1039 = vmatprep.subr.bf16.mxu0 0
    %1040 = vmatpush1.bf16.msra.mxu0 0
    %1041 = vmatprep.mubr.bf16.mxu0 0
    %1042 = vmatmul.mubr.bf16.gmra.mrb[0].mxu0 %v1004
    %v1043 = vpop.f32.mrb[0].mxu0
    %v1044 = vadd.f32 0.0, %v1043
    %v1045 = vpop.f32.mrb[0].mxu0
    %v1046 = vpop.f32.mrb[0].mxu0
    %v1047 = vpop.f32.mrb[0].mxu0
    %1048 = vdwg.mxu0
    %1050 = vrot.lane.b32.xlu0 %v822, 8
    %v1051 = vpop.permute.xlu0 %1050
    %1054 = vrot.lane.b32.xlu0 %v933, 16
    %v1055 = vpop.permute.xlu0 %1054
    %1058 = vrot.lane.b32.xlu0 %v1044, 24
    %v1059 = vpop.permute.xlu0 %1058
    %v1061 = vsel %vm147, %v711, %v1051
    %v1062 = vsel %vm602, %v1061, %v1055
    %v1063 = vsel %vm604, %v1062, %v1059
    %v1064 = vpack.c.bf16 %v1063, %v605
    %v1065 = vld [vmem:[#allocation7] sm:$0xf]
    %v1066 = vld [vmem:[#allocation7 + $0x4] sm:$0xf]
    %v1067 = vld [vmem:[#allocation7 + $0x8] sm:$0xf]
    %v1068 = vld [vmem:[#allocation7 + $0xc] sm:$0xf]
    %v1069 = vld [vmem:[%s4] sm:$0x1]
    %v1071 = vlaneseq
    %v1072 = vshrl.u32 %v1071, 7
    %v1073 = vsub.s32 0, %v1072
    %v1074 = vrot.slane %v1069, %v1073
    %v1080 = vunpack.c.l.b16 %v1065
    %v1081 = vunpack.c.l.b16 %v1066
    %v1082 = vunpack.c.l.b16 %v1067
    %v1083 = vunpack.c.l.b16 %v1068
    %v1084 = vpack.c.b16 %v1081, %v1080
    %v1085 = vpack.c.b16 %v1083, %v1082
    %v1089 = vsel %vm93, %v1064, 0
    %1091 = vmatprep.subr.bf16.mxu0 0
    %1092 = vmatpush1.bf16.msra.mxu0 %v1084
    %1093 = vmatprep.subr.bf16.mxu0 0
    %1094 = vmatpush1.bf16.msra.mxu0 %v1085
    %1095 = vmatprep.subr.bf16.mxu0 0
    %1096 = vmatpush1.bf16.msra.mxu0 0
    %1097 = vmatprep.subr.bf16.mxu0 0
    %1098 = vmatpush1.bf16.msra.mxu0 0
    %1099 = vmatprep.subr.bf16.mxu0 0
    %1100 = vmatpush1.bf16.msra.mxu0 0
    %1101 = vmatprep.subr.bf16.mxu0 0
    %1102 = vmatpush1.bf16.msra.mxu0 0
    %1103 = vmatprep.subr.bf16.mxu0 0
    %1104 = vmatpush1.bf16.msra.mxu0 0
    %1105 = vmatprep.subr.bf16.mxu0 0
    %1106 = vmatpush1.bf16.msra.mxu0 0
    %1107 = vmatprep.subr.bf16.mxu0 0
    %1108 = vmatpush1.bf16.msra.mxu0 0
    %1109 = vmatprep.subr.bf16.mxu0 0
    %1110 = vmatpush1.bf16.msra.mxu0 0
    %1111 = vmatprep.subr.bf16.mxu0 0
    %1112 = vmatpush1.bf16.msra.mxu0 0
    %1113 = vmatprep.subr.bf16.mxu0 0
    %1114 = vmatpush1.bf16.msra.mxu0 0
    %1115 = vmatprep.subr.bf16.mxu0 0
    %1116 = vmatpush1.bf16.msra.mxu0 0
    %1117 = vmatprep.subr.bf16.mxu0 0
    %1118 = vmatpush1.bf16.msra.mxu0 0
    %1119 = vmatprep.subr.bf16.mxu0 0
    %1120 = vmatpush1.bf16.msra.mxu0 0
    %1121 = vmatprep.subr.bf16.mxu0 0
    %1122 = vmatpush1.bf16.msra.mxu0 0
    %1123 = vmatprep.mubr.bf16.mxu0 0
    %1124 = vmatmul.mubr.bf16.gmra.mrb[0].mxu0 %v1089
    %v1125 = vpop.f32.mrb[0].mxu0
    %v1126 = vadd.f32 %v1074, %v1125
    %v1127 = vpop.f32.mrb[0].mxu0
    %v1128 = vpop.f32.mrb[0].mxu0
    %v1129 = vadd.f32 %v1074, %v1128
    %v1130 = vpop.f32.mrb[0].mxu0
    %1131 = vdwg.mxu0
    %1132 = vst.msk [vmem:[#allocation8] sm:$0xff] %vm93, %v1126
    %1133 = vst.msk [vmem:[#allocation8 + $0x8] sm:$0xff] %vm93, %v1129
    // Predicated region
    $region34: #{tpu_custom_call.1} parent=1 // pred_check
      _
    $region35: #{tpu_custom_call.1} parent=1 // pred_check_branch
      %1135 = sbr.rel (0) target = $region37
    $region36: #{tpu_custom_call.1} parent=1 // pred_region
      %s1137 = ssub.s32 256, 256
      %1138 = vsyncadd [#allocation4], %s1137
      %s1139 = sshll.u32 [#allocation8], 4
      %s1140 = int_to_ptr.vmem [resolvable:$true] %s1139
      %1145 = dma.vmem_to_hbm [thread:$0]  %s1140, 256, %s5, [#allocation4], 128, 128, 8
    $region37: #{tpu_custom_call.1} parent=1 // pred_fallthru
      _
    // Predicated region
    $region38: #{tpu_custom_call.1} parent=1 // pred_check
      _
    $region39: #{tpu_custom_call.1} parent=1 // pred_check_branch
      %1147 = sbr.rel (0) target = $region41
    $region40: #{tpu_custom_call.1} parent=1 // pred_region
      %1148 = dma.done [#allocation4], 256
    $region41: #{tpu_custom_call.1} parent=1 // pred_fallthru
      _
    %1149 = vsyncpa [#allocation3], 1
    %1150 = vsyncpa [#allocation6], 1
    %1151 = vsyncpa [#allocation4], 1

// kernel: tpu_custom_call.1
$region0: #{tpu_custom_call.1}
  #allocation0 [shape = 'u32[]', space=smem, size = 0x4, offset = 0x4, fixed_abs, tag = 'smem constant byte address 0x4 - core index']
  #allocation1 [shape = 'u32[144,128]{1,0:T(1,128)}', space=vmem, size = 0x12000, scoped, tag = 'internal scratch']
  %s0 = inlined_call_operand.hbm [shape: bf16[16,32], index: 0, kind: input, shape index: {}]
  %s1 = inlined_call_operand.hbm [shape: bf16[32,96], index: 1, kind: input, shape index: {}]
  %s2 = inlined_call_operand.vmem [shape: f32[1,96], index: 2, kind: input, shape index: {}]
  %s3 = inlined_call_operand.hbm [shape: bf16[32,32], index: 3, kind: input, shape index: {}]
  %s4 = inlined_call_operand.vmem [shape: f32[1,32], index: 4, kind: input, shape index: {}]
  %s5 = inlined_call_operand.hbm [shape: f32[16,32], index: 5, kind: output, shape index: {}]
  %s6 = sld [smem:[#allocation0]]
  $region42: #{tpu_custom_call.1} parent=0
    _
  %s8 = ssub.s32 1, %s6
  %s9 = scalar_select 0, %s8, %s6
  $region1: #{tpu_custom_call.1} parent=0
    #allocation2 [shape = 'u8[4096]{0}', space=vmem, size = 0x1000, scoped, tag = 'input window, operand 0, single buffered']
    #allocation3 [shape = 's32[1]{0}', space=sflag, size = 0x4, scoped, tag = 'scoped memory for tpu_custom_call.1']
    #allocation4 [shape = 's32[1]{0}', space=sflag, size = 0x4, scoped, tag = 'scoped memory for tpu_custom_call.1']
    #allocation5 [shape = 'u8[8192]{0}', space=vmem, size = 0x2000, scoped, tag = 'input window, operand 1, single buffered']
    #allocation6 [shape = 's32[1]{0}', space=sflag, size = 0x4, scoped, tag = 'scoped memory for tpu_custom_call.1']
    #allocation7 [shape = 'u8[8192]{0}', space=vmem, size = 0x2000, scoped, tag = 'input window, operand 3, single buffered']
    #allocation8 [shape = 'u8[8192]{0}', space=vmem, size = 0x2000, scoped, tag = 'output window, operand 0, single buffered']
    %10 = vsyncpa [#allocation3], 0
    %11 = vsyncpa [#allocation6], 0
    %12 = vsyncpa [#allocation4], 0
    // Predicated region
    $region2: #{tpu_custom_call.1} parent=1 // pred_check
      _
    $region3: #{tpu_custom_call.1} parent=1 // pred_check_branch
      %14 = sbr.rel (0) target = $region5
    $region4: #{tpu_custom_call.1} parent=1 // pred_region
      %s16 = ssub.s32 128, 128
      %17 = vsyncadd [#allocation3], %s16
      %s18 = sshll.u32 [#allocation2], 4
      %s19 = int_to_ptr.vmem [resolvable:$true] %s18
      %24 = dma.hbm_to_vmem [thread:$0]  %s0, 128, %s19, [#allocation3], 64, 64, 4
    $region5: #{tpu_custom_call.1} parent=1 // pred_fallthru
      _
    // Predicated region
    $region6: #{tpu_custom_call.1} parent=1 // pred_check
      _
    $region7: #{tpu_custom_call.1} parent=1 // pred_check_branch
      %26 = sbr.rel (0) target = $region9
    $region8: #{tpu_custom_call.1} parent=1 // pred_region
      %s28 = ssub.s32 256, 256
      %29 = vsyncadd [#allocation6], %s28
      %s30 = sshll.u32 [#allocation5], 4
      %s31 = int_to_ptr.vmem [resolvable:$true] %s30
      %36 = dma.hbm_to_vmem [thread:$0]  %s1, 256, %s31, [#allocation6], 64, 64, 4
    $region9: #{tpu_custom_call.1} parent=1 // pred_fallthru
      _
    // Predicated region
    $region10: #{tpu_custom_call.1} parent=1 // pred_check
      _
    $region11: #{tpu_custom_call.1} parent=1 // pred_check_branch
      %38 = sbr.rel (0) target = $region13
    $region12: #{tpu_custom_call.1} parent=1 // pred_region
      _
    $region13: #{tpu_custom_call.1} parent=1 // pred_fallthru
      _
    // Predicated region
    $region14: #{tpu_custom_call.1} parent=1 // pred_check
      _
    $region15: #{tpu_custom_call.1} parent=1 // pred_check_branch
      %40 = sbr.rel (0) target = $region17
    $region16: #{tpu_custom_call.1} parent=1 // pred_region
      %s42 = ssub.s32 256, 256
      %43 = vsyncadd [#allocation6], %s42
      %s44 = sshll.u32 [#allocation7], 4
      %s45 = int_to_ptr.vmem [resolvable:$true] %s44
      %50 = dma.hbm_to_vmem [thread:$0]  %s3, 256, %s45, [#allocation6], 64, 64, 4
    $region17: #{tpu_custom_call.1} parent=1 // pred_fallthru
      _
    // Predicated region
    $region18: #{tpu_custom_call.1} parent=1 // pred_check
      _
    $region19: #{tpu_custom_call.1} parent=1 // pred_check_branch
      %52 = sbr.rel (0) target = $region21
    $region20: #{tpu_custom_call.1} parent=1 // pred_region
      _
    $region21: #{tpu_custom_call.1} parent=1 // pred_fallthru
      _
    // Predicated region
    $region22: #{tpu_custom_call.1} parent=1 // pred_check
      _
    $region23: #{tpu_custom_call.1} parent=1 // pred_check_branch
      %54 = sbr.rel (0) target = $region25
    $region24: #{tpu_custom_call.1} parent=1 // pred_region
      %55 = dma.done [#allocation3], 128
    $region25: #{tpu_custom_call.1} parent=1 // pred_fallthru
      _
    // Predicated region
    $region26: #{tpu_custom_call.1} parent=1 // pred_check
      _
    $region27: #{tpu_custom_call.1} parent=1 // pred_check_branch
      %57 = sbr.rel (0) target = $region29
    $region28: #{tpu_custom_call.1} parent=1 // pred_region
      %58 = dma.done [#allocation6], 256
    $region29: #{tpu_custom_call.1} parent=1 // pred_fallthru
      _
    // Predicated region
    $region30: #{tpu_custom_call.1} parent=1 // pred_check
      _
    $region31: #{tpu_custom_call.1} parent=1 // pred_check_branch
      %60 = sbr.rel (0) target = $region33
    $region32: #{tpu_custom_call.1} parent=1 // pred_region
      %61 = dma.done [#allocation6], 256
    $region33: #{tpu_custom_call.1} parent=1 // pred_fallthru
      _
    %v63 = vld [vmem:[#allocation2] sm:$0xf]
    %v64 = vld [vmem:[#allocation2 + $0x4] sm:$0xf]
    %v65 = vld [vmem:[#allocation5] sm:$0xf]
    %v66 = vld [vmem:[#allocation5 + $0x4] sm:$0xf]
    %v67 = vld [vmem:[#allocation5 + $0x8] sm:$0xf]
    %v68 = vld [vmem:[#allocation5 + $0xc] sm:$0xf]
    %v69 = vld [vmem:[%s2] sm:$0x1]
    %v71 = vlaneseq
    %v72 = vshrl.u32 %v71, 7
    %v73 = vsub.s32 0, %v72
    %v74 = vrot.slane %v69, %v73
    %v78 = vunpack.c.l.b16 %v63
    %v79 = vunpack.c.l.b16 %v64
    %v80 = vpack.c.b16 %v79, %v78
    %v85 = vunpack.c.l.b16 %v65
    %v86 = vunpack.c.l.b16 %v66
    %v87 = vunpack.c.l.b16 %v67
    %v88 = vunpack.c.l.b16 %v68
    %v89 = vpack.c.b16 %v86, %v85
    %v90 = vpack.c.b16 %v88, %v87
    %vm93 = vcmask 261120
    %v95 = vsel %vm93, %v80, 0
    %97 = vmatprep.subr.bf16.mxu0 0
    %98 = vmatpush1.bf16.msra.mxu0 %v89
    %99 = vmatprep.subr.bf16.mxu0 0
    %100 = vmatpush1.bf16.msra.mxu0 %v90
    %101 = vmatprep.subr.bf16.mxu0 0
    %102 = vmatpush1.bf16.msra.mxu0 0
    %103 = vmatprep.subr.bf16.mxu0 0
    %104 = vmatpush1.bf16.msra.mxu0 0
    %105 = vmatprep.subr.bf16.mxu0 0
    %106 = vmatpush1.bf16.msra.mxu0 0
    %107 = vmatprep.subr.bf16.mxu0 0
    %108 = vmatpush1.bf16.msra.mxu0 0
    %109 = vmatprep.subr.bf16.mxu0 0
    %110 = vmatpush1.bf16.msra.mxu0 0
    %111 = vmatprep.subr.bf16.mxu0 0
    %112 = vmatpush1.bf16.msra.mxu0 0
    %113 = vmatprep.subr.bf16.mxu0 0
    %114 = vmatpush1.bf16.msra.mxu0 0
    %115 = vmatprep.subr.bf16.mxu0 0
    %116 = vmatpush1.bf16.msra.mxu0 0
    %117 = vmatprep.subr.bf16.mxu0 0
    %118 = vmatpush1.bf16.msra.mxu0 0
    %119 = vmatprep.subr.bf16.mxu0 0
    %120 = vmatpush1.bf16.msra.mxu0 0
    %121 = vmatprep.subr.bf16.mxu0 0
    %122 = vmatpush1.bf16.msra.mxu0 0
    %123 = vmatprep.subr.bf16.mxu0 0
    %124 = vmatpush1.bf16.msra.mxu0 0
    %125 = vmatprep.subr.bf16.mxu0 0
    %126 = vmatpush1.bf16.msra.mxu0 0
    %127 = vmatprep.subr.bf16.mxu0 0
    %128 = vmatpush1.bf16.msra.mxu0 0
    %129 = vmatprep.mubr.bf16.mxu0 0
    %130 = vmatmul.mubr.bf16.gmra.mrb[0].mxu0 %v95
    %v131 = vpop.f32.mrb[0].mxu0
    %v132 = vadd.f32 %v74, %v131
    %v133 = vpop.f32.mrb[0].mxu0
    %v134 = vpop.f32.mrb[0].mxu0
    %v135 = vadd.f32 %v74, %v134
    %v136 = vpop.f32.mrb[0].mxu0
    %137 = vdwg.mxu0
    %v138 = vpack.c.bf16 %v135, %v132
    %v139 = vlaneseq
    %v140 = vshrl.u32 %v139, 7
    %v141 = vlaneseq
    %v142 = vand.u32 %v141, 127
    %vm143 = vcmp.le.s32.totalorder %v142, %v140
    %145 = vrot.lane.b32.xlu0 %v138, 96
    %v146 = vpop.permute.xlu0 %145
    %vm147 = vcmask 64512
    %v149 = vsel %vm147, %v138, 0
    %v152 = vsel %vm147, %v146, 0
    %154 = vmatprep.subr.bf16.mxu0 0
    %155 = vmatpush1.bf16.xpose.msra.mxu0 %v152
    %156 = vmatprep.subr.bf16.mxu0 0
    %157 = vmatpush1.bf16.xpose.msra.mxu0 0
    %158 = vmatprep.subr.bf16.mxu0 0
    %159 = vmatpush1.bf16.xpose.msra.mxu0 0
    %160 = vmatprep.subr.bf16.mxu0 0
    %161 = vmatpush1.bf16.xpose.msra.mxu0 0
    %162 = vmatprep.subr.bf16.mxu0 0
    %163 = vmatpush1.bf16.xpose.msra.mxu0 0
    %164 = vmatprep.subr.bf16.mxu0 0
    %165 = vmatpush1.bf16.xpose.msra.mxu0 0
    %166 = vmatprep.subr.bf16.mxu0 0
    %167 = vmatpush1.bf16.xpose.msra.mxu0 0
    %168 = vmatprep.subr.bf16.mxu0 0
    %169 = vmatpush1.bf16.xpose.msra.mxu0 0
    %170 = vmatprep.subr.bf16.mxu0 0
    %171 = vmatpush1.bf16.xpose.msra.mxu0 0
    %172 = vmatprep.subr.bf16.mxu0 0
    %173 = vmatpush1.bf16.xpose.msra.mxu0 0
    %174 = vmatprep.subr.bf16.mxu0 0
    %175 = vmatpush1.bf16.xpose.msra.mxu0 0
    %176 = vmatprep.subr.bf16.mxu0 0
    %177 = vmatpush1.bf16.xpose.msra.mxu0 0
    %178 = vmatprep.subr.bf16.mxu0 0
    %179 = vmatpush1.bf16.xpose.msra.mxu0 0
    %180 = vmatprep.subr.bf16.mxu0 0
    %181 = vmatpush1.bf16.xpose.msra.mxu0 0
    %182 = vmatprep.subr.bf16.mxu0 0
    %183 = vmatpush1.bf16.xpose.msra.mxu0 0
    %184 = vmatprep.subr.bf16.mxu0 0
    %185 = vmatpush1.bf16.xpose.msra.mxu0 0
    %186 = vmatprep.mubr.bf16.mxu0 0
    %187 = vmatmul.mubr.bf16.gmra.mrb[0].mxu0 %v149
    %v188 = vpop.f32.mrb[0].mxu0
    %v189 = vadd.f32 0.0, %v188
    %v190 = vpop.f32.mrb[0].mxu0
    %v191 = vpop.f32.mrb[0].mxu0
    %v192 = vpop.f32.mrb[0].mxu0
    %193 = vdwg.mxu0
    %v194 = vsel %vm143, %v189, -1e+30
    %v195 = vsel %vm147, %v194, -inf
    %196 = vmax.xlane.f32.xlu0 %v195
    %v197 = vpop.xlane.xlu0 %196
    %v198 = vsub.f32 %v194, %v197
    %v199 = vmul.f32 %v198, 1.442695
    %v200 = vpow.pop %v199
    %v201 = vsel %vm147, %v200, 0.0
    %202 = vadd.xlane.f32.xlu0 %v201
    %v203 = vpop.xlane.xlu0 %202
    %v204 = vrcp.pop %v203
    %v205 = vmul.f32 %v200, %v204
    %v206 = vpack.c.bf16 %v205, %v205
    %207 = vrot.lane.b32.xlu0 %v138, 64
    %v208 = vpop.permute.xlu0 %207
    %v210 = vsel %vm147, %v206, 0
    %vm212 = vcmask 1043456
    %v214 = vsel %vm212, %v208, 0
    %216 = vmatprep.subr.bf16.mxu0 0
    %217 = vmatpush1.bf16.msra.mxu0 %v214
    %218 = vmatprep.subr.bf16.mxu0 0
    %219 = vmatpush1.bf16.msra.mxu0 0
    %220 = vmatprep.subr.bf16.mxu0 0
    %221 = vmatpush1.bf16.msra.mxu0 0
    %222 = vmatprep.subr.bf16.mxu0 0
    %223 = vmatpush1.bf16.msra.mxu0 0
    %224 = vmatprep.subr.bf16.mxu0 0
    %225 = vmatpush1.bf16.msra.mxu0 0
    %226 = vmatprep.subr.bf16.mxu0 0
    %227 = vmatpush1.bf16.msra.mxu0 0
    %228 = vmatprep.subr.bf16.mxu0 0
    %229 = vmatpush1.bf16.msra.mxu0 0
    %230 = vmatprep.subr.bf16.mxu0 0
    %231 = vmatpush1.bf16.msra.mxu0 0
    %232 = vmatprep.subr.bf16.mxu0 0
    %233 = vmatpush1.bf16.msra.mxu0 0
    %234 = vmatprep.subr.bf16.mxu0 0
    %235 = vmatpush1.bf16.msra.mxu0 0
    %236 = vmatprep.subr.bf16.mxu0 0
    %237 = vmatpush1.bf16.msra.mxu0 0
    %238 = vmatprep.subr.bf16.mxu0 0
    %239 = vmatpush1.bf16.msra.mxu0 0
    %240 = vmatprep.subr.bf16.mxu0 0
    %241 = vmatpush1.bf16.msra.mxu0 0
    %242 = vmatprep.subr.bf16.mxu0 0
    %243 = vmatpush1.bf16.msra.mxu0 0
    %244 = vmatprep.subr.bf16.mxu0 0
    %245 = vmatpush1.bf16.msra.mxu0 0
    %246 = vmatprep.subr.bf16.mxu0 0
    %247 = vmatpush1.bf16.msra.mxu0 0
    %248 = vmatprep.mubr.bf16.mxu0 0
    %249 = vmatmul.mubr.bf16.gmra.mrb[0].mxu0 %v210
    %v250 = vpop.f32.mrb[0].mxu0
    %v251 = vadd.f32 0.0, %v250
    %v252 = vpop.f32.mrb[0].mxu0
    %v253 = vpop.f32.mrb[0].mxu0
    %v254 = vpop.f32.mrb[0].mxu0
    %255 = vdwg.mxu0
    %256 = vrot.lane.b32.xlu0 %v138, 120
    %v257 = vpop.permute.xlu0 %256
    %258 = vrot.lane.b32.xlu0 %v138, 88
    %v259 = vpop.permute.xlu0 %258
    %v261 = vsel %vm147, %v257, 0
    %v264 = vsel %vm147, %v259, 0
    %266 = vmatprep.subr.bf16.mxu0 0
    %267 = vmatpush1.bf16.xpose.msra.mxu0 %v264
    %268 = vmatprep.subr.bf16.mxu0 0
    %269 = vmatpush1.bf16.xpose.msra.mxu0 0
    %270 = vmatprep.subr.bf16.mxu0 0
    %271 = vmatpush1.bf16.xpose.msra.mxu0 0
    %272 = vmatprep.subr.bf16.mxu0 0
    %273 = vmatpush1.bf16.xpose.msra.mxu0 0
    %274 = vmatprep.subr.bf16.mxu0 0
    %275 = vmatpush1.bf16.xpose.msra.mxu0 0
    %276 = vmatprep.subr.bf16.mxu0 0
    %277 = vmatpush1.bf16.xpose.msra.mxu0 0
    %278 = vmatprep.subr.bf16.mxu0 0
    %279 = vmatpush1.bf16.xpose.msra.mxu0 0
    %280 = vmatprep.subr.bf16.mxu0 0
    %281 = vmatpush1.bf16.xpose.msra.mxu0 0
    %282 = vmatprep.subr.bf16.mxu0 0
    %283 = vmatpush1.bf16.xpose.msra.mxu0 0
    %284 = vmatprep.subr.bf16.mxu0 0
    %285 = vmatpush1.bf16.xpose.msra.mxu0 0
    %286 = vmatprep.subr.bf16.mxu0 0
    %287 = vmatpush1.bf16.xpose.msra.mxu0 0
    %288 = vmatprep.subr.bf16.mxu0 0
    %289 = vmatpush1.bf16.xpose.msra.mxu0 0
    %290 = vmatprep.subr.bf16.mxu0 0
    %291 = vmatpush1.bf16.xpose.msra.mxu0 0
    %292 = vmatprep.subr.bf16.mxu0 0
    %293 = vmatpush1.bf16.xpose.msra.mxu0 0
    %294 = vmatprep.subr.bf16.mxu0 0
    %295 = vmatpush1.bf16.xpose.msra.mxu0 0
    %296 = vmatprep.subr.bf16.mxu0 0
    %297 = vmatpush1.bf16.xpose.msra.mxu0 0
    %298 = vmatprep.mubr.bf16.mxu0 0
    %299 = vmatmul.mubr.bf16.gmra.mrb[0].mxu0 %v261
    %v300 = vpop.f32.mrb[0].mxu0
    %v301 = vadd.f32 0.0, %v300
    %v302 = vpop.f32.mrb[0].mxu0
    %v303 = vpop.f32.mrb[0].mxu0
    %v304 = vpop.f32.mrb[0].mxu0
    %305 = vdwg.mxu0
    %v306 = vsel %vm143, %v301, -1e+30
    %v307 = vsel %vm147, %v306, -inf
    %308 = vmax.xlane.f32.xlu0 %v307
    %v309 = vpop.xlane.xlu0 %308
    %v310 = vsub.f32 %v306, %v309
    %v311 = vmul.f32 %v310, 1.442695
    %v312 = vpow.pop %v311
    %v313 = vsel %vm147, %v312, 0.0
    %314 = vadd.xlane.f32.xlu0 %v313
    %v315 = vpop.xlane.xlu0 %314
    %v316 = vrcp.pop %v315
    %v317 = vmul.f32 %v312, %v316
    %v318 = vpack.c.bf16 %v317, %v317
    %319 = vrot.lane.b32.xlu0 %v138, 56
    %v320 = vpop.permute.xlu0 %319
    %v322 = vsel %vm147, %v318, 0
    %v325 = vsel %vm212, %v320, 0
    %327 = vmatprep.subr.bf16.mxu0 0
    %328 = vmatpush1.bf16.msra.mxu0 %v325
    %329 = vmatprep.subr.bf16.mxu0 0
    %330 = vmatpush1.bf16.msra.mxu0 0
    %331 = vmatprep.subr.bf16.mxu0 0
    %332 = vmatpush1.bf16.msra.mxu0 0
    %333 = vmatprep.subr.bf16.mxu0 0
    %334 = vmatpush1.bf16.msra.mxu0 0
    %335 = vmatprep.subr.bf16.mxu0 0
    %336 = vmatpush1.bf16.msra.mxu0 0
    %337 = vmatprep.subr.bf16.mxu0 0
    %338 = vmatpush1.bf16.msra.mxu0 0
    %339 = vmatprep.subr.bf16.mxu0 0
    %340 = vmatpush1.bf16.msra.mxu0 0
    %341 = vmatprep.subr.bf16.mxu0 0
    %342 = vmatpush1.bf16.msra.mxu0 0
    %343 = vmatprep.subr.bf16.mxu0 0
    %344 = vmatpush1.bf16.msra.mxu0 0
    %345 = vmatprep.subr.bf16.mxu0 0
    %346 = vmatpush1.bf16.msra.mxu0 0
    %347 = vmatprep.subr.bf16.mxu0 0
    %348 = vmatpush1.bf16.msra.mxu0 0
    %349 = vmatprep.subr.bf16.mxu0 0
    %350 = vmatpush1.bf16.msra.mxu0 0
    %351 = vmatprep.subr.bf16.mxu0 0
    %352 = vmatpush1.bf16.msra.mxu0 0
    %353 = vmatprep.subr.bf16.mxu0 0
    %354 = vmatpush1.bf16.msra.mxu0 0
    %355 = vmatprep.subr.bf16.mxu0 0
    %356 = vmatpush1.bf16.msra.mxu0 0
    %357 = vmatprep.subr.bf16.mxu0 0
    %358 = vmatpush1.bf16.msra.mxu0 0
    %359 = vmatprep.mubr.bf16.mxu0 0
    %360 = vmatmul.mubr.bf16.gmra.mrb[0].mxu0 %v322
    %v361 = vpop.f32.mrb[0].mxu0
    %v362 = vadd.f32 0.0, %v361
    %v363 = vpop.f32.mrb[0].mxu0
    %v364 = vpop.f32.mrb[0].mxu0
    %v365 = vpop.f32.mrb[0].mxu0
    %366 = vdwg.mxu0
    %367 = vrot.lane.b32.xlu0 %v138, 112
    %v368 = vpop.permute.xlu0 %367
    %369 = vrot.lane.b32.xlu0 %v138, 80
    %v370 = vpop.permute.xlu0 %369
    %v372 = vsel %vm147, %v368, 0
    %v375 = vsel %vm147, %v370, 0
    %377 = vmatprep.subr.bf16.mxu0 0
    %378 = vmatpush1.bf16.xpose.msra.mxu0 %v375
    %379 = vmatprep.subr.bf16.mxu0 0
    %380 = vmatpush1.bf16.xpose.msra.mxu0 0
    %381 = vmatprep.subr.bf16.mxu0 0
    %382 = vmatpush1.bf16.xpose.msra.mxu0 0
    %383 = vmatprep.subr.bf16.mxu0 0
    %384 = vmatpush1.bf16.xpose.msra.mxu0 0
    %385 = vmatprep.subr.bf16.mxu0 0
    %386 = vmatpush1.bf16.xpose.msra.mxu0 0
    %387 = vmatprep.subr.bf16.mxu0 0
    %388 = vmatpush1.bf16.xpose.msra.mxu0 0
    %389 = vmatprep.subr.bf16.mxu0 0
    %390 = vmatpush1.bf16.xpose.msra.mxu0 0
    %391 = vmatprep.subr.bf16.mxu0 0
    %392 = vmatpush1.bf16.xpose.msra.mxu0 0
    %393 = vmatprep.subr.bf16.mxu0 0
    %394 = vmatpush1.bf16.xpose.msra.mxu0 0
    %395 = vmatprep.subr.bf16.mxu0 0
    %396 = vmatpush1.bf16.xpose.msra.mxu0 0
    %397 = vmatprep.subr.bf16.mxu0 0
    %398 = vmatpush1.bf16.xpose.msra.mxu0 0
    %399 = vmatprep.subr.bf16.mxu0 0
    %400 = vmatpush1.bf16.xpose.msra.mxu0 0
    %401 = vmatprep.subr.bf16.mxu0 0
    %402 = vmatpush1.bf16.xpose.msra.mxu0 0
    %403 = vmatprep.subr.bf16.mxu0 0
    %404 = vmatpush1.bf16.xpose.msra.mxu0 0
    %405 = vmatprep.subr.bf16.mxu0 0
    %406 = vmatpush1.bf16.xpose.msra.mxu0 0
    %407 = vmatprep.subr.bf16.mxu0 0
    %408 = vmatpush1.bf16.xpose.msra.mxu0 0
    %409 = vmatprep.mubr.bf16.mxu0 0
    %410 = vmatmul.mubr.bf16.gmra.mrb[0].mxu0 %v372
    %v411 = vpop.f32.mrb[0].mxu0
    %v412 = vadd.f32 0.0, %v411
    %v413 = vpop.f32.mrb[0].mxu0
    %v414 = vpop.f32.mrb[0].mxu0
    %v415 = vpop.f32.mrb[0].mxu0
    %416 = vdwg.mxu0
    %v417 = vsel %vm143, %v412, -1e+30
    %v418 = vsel %vm147, %v417, -inf
    %419 = vmax.xlane.f32.xlu0 %v418
    %v420 = vpop.xlane.xlu0 %419
    %v421 = vsub.f32 %v417, %v420
    %v422 = vmul.f32 %v421, 1.442695
    %v423 = vpow.pop %v422
    %v424 = vsel %vm147, %v423, 0.0
    %425 = vadd.xlane.f32.xlu0 %v424
    %v426 = vpop.xlane.xlu0 %425
    %v427 = vrcp.pop %v426
    %v428 = vmul.f32 %v423, %v427
    %v429 = vpack.c.bf16 %v428, %v428
    %430 = vrot.lane.b32.xlu0 %v138, 48
    %v431 = vpop.permute.xlu0 %430
    %v433 = vsel %vm147, %v429, 0
    %v436 = vsel %vm212, %v431, 0
    %438 = vmatprep.subr.bf16.mxu0 0
    %439 = vmatpush1.bf16.msra.mxu0 %v436
    %440 = vmatprep.subr.bf16.mxu0 0
    %441 = vmatpush1.bf16.msra.mxu0 0
    %442 = vmatprep.subr.bf16.mxu0 0
    %443 = vmatpush1.bf16.msra.mxu0 0
    %444 = vmatprep.subr.bf16.mxu0 0
    %445 = vmatpush1.bf16.msra.mxu0 0
    %446 = vmatprep.subr.bf16.mxu0 0
    %447 = vmatpush1.bf16.msra.mxu0 0
    %448 = vmatprep.subr.bf16.mxu0 0
    %449 = vmatpush1.bf16.msra.mxu0 0
    %450 = vmatprep.subr.bf16.mxu0 0
    %451 = vmatpush1.bf16.msra.mxu0 0
    %452 = vmatprep.subr.bf16.mxu0 0
    %453 = vmatpush1.bf16.msra.mxu0 0
    %454 = vmatprep.subr.bf16.mxu0 0
    %455 = vmatpush1.bf16.msra.mxu0 0
    %456 = vmatprep.subr.bf16.mxu0 0
    %457 = vmatpush1.bf16.msra.mxu0 0
    %458 = vmatprep.subr.bf16.mxu0 0
    %459 = vmatpush1.bf16.msra.mxu0 0
    %460 = vmatprep.subr.bf16.mxu0 0
    %461 = vmatpush1.bf16.msra.mxu0 0
    %462 = vmatprep.subr.bf16.mxu0 0
    %463 = vmatpush1.bf16.msra.mxu0 0
    %464 = vmatprep.subr.bf16.mxu0 0
    %465 = vmatpush1.bf16.msra.mxu0 0
    %466 = vmatprep.subr.bf16.mxu0 0
    %467 = vmatpush1.bf16.msra.mxu0 0
    %468 = vmatprep.subr.bf16.mxu0 0
    %469 = vmatpush1.bf16.msra.mxu0 0
    %470 = vmatprep.mubr.bf16.mxu0 0
    %471 = vmatmul.mubr.bf16.gmra.mrb[0].mxu0 %v433
    %v472 = vpop.f32.mrb[0].mxu0
    %v473 = vadd.f32 0.0, %v472
    %v474 = vpop.f32.mrb[0].mxu0
    %v475 = vpop.f32.mrb[0].mxu0
    %v476 = vpop.f32.mrb[0].mxu0
    %477 = vdwg.mxu0
    %478 = vrot.lane.b32.xlu0 %v138, 104
    %v479 = vpop.permute.xlu0 %478
    %480 = vrot.lane.b32.xlu0 %v138, 72
    %v481 = vpop.permute.xlu0 %480
    %v483 = vsel %vm147, %v479, 0
    %v486 = vsel %vm147, %v481, 0
    %488 = vmatprep.subr.bf16.mxu0 0
    %489 = vmatpush1.bf16.xpose.msra.mxu0 %v486
    %490 = vmatprep.subr.bf16.mxu0 0
    %491 = vmatpush1.bf16.xpose.msra.mxu0 0
    %492 = vmatprep.subr.bf16.mxu0 0
    %493 = vmatpush1.bf16.xpose.msra.mxu0 0
    %494 = vmatprep.subr.bf16.mxu0 0
    %495 = vmatpush1.bf16.xpose.msra.mxu0 0
    %496 = vmatprep.subr.bf16.mxu0 0
    %497 = vmatpush1.bf16.xpose.msra.mxu0 0
    %498 = vmatprep.subr.bf16.mxu0 0
    %499 = vmatpush1.bf16.xpose.msra.mxu0 0
    %500 = vmatprep.subr.bf16.mxu0 0
    %501 = vmatpush1.bf16.xpose.msra.mxu0 0
    %502 = vmatprep.subr.bf16.mxu0 0
    %503 = vmatpush1.bf16.xpose.msra.mxu0 0
    %504 = vmatprep.subr.bf16.mxu0 0
    %505 = vmatpush1.bf16.xpose.msra.mxu0 0
    %506 = vmatprep.subr.bf16.mxu0 0
    %507 = vmatpush1.bf16.xpose.msra.mxu0 0
    %508 = vmatprep.subr.bf16.mxu0 0
    %509 = vmatpush1.bf16.xpose.msra.mxu0 0
    %510 = vmatprep.subr.bf16.mxu0 0
    %511 = vmatpush1.bf16.xpose.msra.mxu0 0
    %512 = vmatprep.subr.bf16.mxu0 0
    %513 = vmatpush1.bf16.xpose.msra.mxu0 0
    %514 = vmatprep.subr.bf16.mxu0 0
    %515 = vmatpush1.bf16.xpose.msra.mxu0 0
    %516 = vmatprep.subr.bf16.mxu0 0
    %517 = vmatpush1.bf16.xpose.msra.mxu0 0
    %518 = vmatprep.subr.bf16.mxu0 0
    %519 = vmatpush1.bf16.xpose.msra.mxu0 0
    %520 = vmatprep.mubr.bf16.mxu0 0
    %521 = vmatmul.mubr.bf16.gmra.mrb[0].mxu0 %v483
    %v522 = vpop.f32.mrb[0].mxu0
    %v523 = vadd.f32 0.0, %v522
    %v524 = vpop.f32.mrb[0].mxu0
    %v525 = vpop.f32.mrb[0].mxu0
    %v526 = vpop.f32.mrb[0].mxu0
    %527 = vdwg.mxu0
    %v528 = vsel %vm143, %v523, -1e+30
    %v529 = vsel %vm147, %v528, -inf
    %530 = vmax.xlane.f32.xlu0 %v529
    %v531 = vpop.xlane.xlu0 %530
    %v532 = vsub.f32 %v528, %v531
    %v533 = vmul.f32 %v532, 1.442695
    %v534 = vpow.pop %v533
    %v535 = vsel %vm147, %v534, 0.0
    %536 = vadd.xlane.f32.xlu0 %v535
    %v537 = vpop.xlane.xlu0 %536
    %v538 = vrcp.pop %v537
    %v539 = vmul.f32 %v534, %v538
    %v540 = vpack.c.bf16 %v539, %v539
    %541 = vrot.lane.b32.xlu0 %v138, 40
    %v542 = vpop.permute.xlu0 %541
    %v544 = vsel %vm147, %v540, 0
    %v547 = vsel %vm212, %v542, 0
    %549 = vmatprep.subr.bf16.mxu0 0
    %550 = vmatpush1.bf16.msra.mxu0 %v547
    %551 = vmatprep.subr.bf16.mxu0 0
    %552 = vmatpush1.bf16.msra.mxu0 0
    %553 = vmatprep.subr.bf16.mxu0 0
    %554 = vmatpush1.bf16.msra.mxu0 0
    %555 = vmatprep.subr.bf16.mxu0 0
    %556 = vmatpush1.bf16.msra.mxu0 0
    %557 = vmatprep.subr.bf16.mxu0 0
    %558 = vmatpush1.bf16.msra.mxu0 0
    %559 = vmatprep.subr.bf16.mxu0 0
    %560 = vmatpush1.bf16.msra.mxu0 0
    %561 = vmatprep.subr.bf16.mxu0 0
    %562 = vmatpush1.bf16.msra.mxu0 0
    %563 = vmatprep.subr.bf16.mxu0 0
    %564 = vmatpush1.bf16.msra.mxu0 0
    %565 = vmatprep.subr.bf16.mxu0 0
    %566 = vmatpush1.bf16.msra.mxu0 0
    %567 = vmatprep.subr.bf16.mxu0 0
    %568 = vmatpush1.bf16.msra.mxu0 0
    %569 = vmatprep.subr.bf16.mxu0 0
    %570 = vmatpush1.bf16.msra.mxu0 0
    %571 = vmatprep.subr.bf16.mxu0 0
    %572 = vmatpush1.bf16.msra.mxu0 0
    %573 = vmatprep.subr.bf16.mxu0 0
    %574 = vmatpush1.bf16.msra.mxu0 0
    %575 = vmatprep.subr.bf16.mxu0 0
    %576 = vmatpush1.bf16.msra.mxu0 0
    %577 = vmatprep.subr.bf16.mxu0 0
    %578 = vmatpush1.bf16.msra.mxu0 0
    %579 = vmatprep.subr.bf16.mxu0 0
    %580 = vmatpush1.bf16.msra.mxu0 0
    %581 = vmatprep.mubr.bf16.mxu0 0
    %582 = vmatmul.mubr.bf16.gmra.mrb[0].mxu0 %v544
    %v583 = vpop.f32.mrb[0].mxu0
    %v584 = vadd.f32 0.0, %v583
    %v585 = vpop.f32.mrb[0].mxu0
    %v586 = vpop.f32.mrb[0].mxu0
    %v587 = vpop.f32.mrb[0].mxu0
    %588 = vdwg.mxu0
    %590 = vrot.lane.b32.xlu0 %v362, 8
    %v591 = vpop.permute.xlu0 %590
    %594 = vrot.lane.b32.xlu0 %v473, 16
    %v595 = vpop.permute.xlu0 %594
    %598 = vrot.lane.b32.xlu0 %v584, 24
    %v599 = vpop.permute.xlu0 %598
    %v601 = vsel %vm147, %v251, %v591
    %vm602 = vcmask 130048
    %v603 = vsel %vm602, %v601, %v595
    %vm604 = vcmask 195584
    %v605 = vsel %vm604, %v603, %v599
    %v606 = vrot.slane %v138, 4
    %607 = vrot.lane.b32.xlu0 %v606, 96
    %v608 = vpop.permute.xlu0 %607
    %v610 = vsel %vm147, %v606, 0
    %v613 = vsel %vm147, %v608, 0
    %615 = vmatprep.subr.bf16.mxu0 0
    %616 = vmatpush1.bf16.xpose.msra.mxu0 %v613
    %617 = vmatprep.subr.bf16.mxu0 0
    %618 = vmatpush1.bf16.xpose.msra.mxu0 0
    %619 = vmatprep.subr.bf16.mxu0 0
    %620 = vmatpush1.bf16.xpose.msra.mxu0 0
    %621 = vmatprep.subr.bf16.mxu0 0
    %622 = vmatpush1.bf16.xpose.msra.mxu0 0
    %623 = vmatprep.subr.bf16.mxu0 0
    %624 = vmatpush1.bf16.xpose.msra.mxu0 0
    %625 = vmatprep.subr.bf16.mxu0 0
    %626 = vmatpush1.bf16.xpose.msra.mxu0 0
    %627 = vmatprep.subr.bf16.mxu0 0
    %628 = vmatpush1.bf16.xpose.msra.mxu0 0
    %629 = vmatprep.subr.bf16.mxu0 0
    %630 = vmatpush1.bf16.xpose.msra.mxu0 0
    %631 = vmatprep.subr.bf16.mxu0 0
    %632 = vmatpush1.bf16.xpose.msra.mxu0 0
    %633 = vmatprep.subr.bf16.mxu0 0
    %634 = vmatpush1.bf16.xpose.msra.mxu0 0
    %635 = vmatprep.subr.bf16.mxu0 0
    %636 = vmatpush1.bf16.xpose.msra.mxu0 0
    %637 = vmatprep.subr.bf16.mxu0 0
    %638 = vmatpush1.bf16.xpose.msra.mxu0 0
    %639 = vmatprep.subr.bf16.mxu0 0
    %640 = vmatpush1.bf16.xpose.msra.mxu0 0
    %641 = vmatprep.subr.bf16.mxu0 0
    %642 = vmatpush1.bf16.xpose.msra.mxu0 0
    %643 = vmatprep.subr.bf16.mxu0 0
    %644 = vmatpush1.bf16.xpose.msra.mxu0 0
    %645 = vmatprep.subr.bf16.mxu0 0
    %646 = vmatpush1.bf16.xpose.msra.mxu0 0
    %647 = vmatprep.mubr.bf16.mxu0 0
    %648 = vmatmul.mubr.bf16.gmra.mrb[0].mxu0 %v610
    %v649 = vpop.f32.mrb[0].mxu0
    %v650 = vadd.f32 0.0, %v649
    %v651 = vpop.f32.mrb[0].mxu0
    %v652 = vpop.f32.mrb[0].mxu0
    %v653 = vpop.f32.mrb[0].mxu0
    %654 = vdwg.mxu0
    %v655 = vsel %vm143, %v650, -1e+30
    %v656 = vsel %vm147, %v655, -inf
    %657 = vmax.xlane.f32.xlu0 %v656
    %v658 = vpop.xlane.xlu0 %657
    %v659 = vsub.f32 %v655, %v658
    %v660 = vmul.f32 %v659, 1.442695
    %v661 = vpow.pop %v660
    %v662 = vsel %vm147, %v661, 0.0
    %663 = vadd.xlane.f32.xlu0 %v662
    %v664 = vpop.xlane.xlu0 %663
    %v665 = vrcp.pop %v664
    %v666 = vmul.f32 %v661, %v665
    %v667 = vpack.c.bf16 %v666, %v666
    %668 = vrot.lane.b32.xlu0 %v606, 64
    %v669 = vpop.permute.xlu0 %668
    %v671 = vsel %vm147, %v667, 0
    %v674 = vsel %vm212, %v669, 0
    %676 = vmatprep.subr.bf16.mxu0 0
    %677 = vmatpush1.bf16.msra.mxu0 %v674
    %678 = vmatprep.subr.bf16.mxu0 0
    %679 = vmatpush1.bf16.msra.mxu0 0
    %680 = vmatprep.subr.bf16.mxu0 0
    %681 = vmatpush1.bf16.msra.mxu0 0
    %682 = vmatprep.subr.bf16.mxu0 0
    %683 = vmatpush1.bf16.msra.mxu0 0
    %684 = vmatprep.subr.bf16.mxu0 0
    %685 = vmatpush1.bf16.msra.mxu0 0
    %686 = vmatprep.subr.bf16.mxu0 0
    %687 = vmatpush1.bf16.msra.mxu0 0
    %688 = vmatprep.subr.bf16.mxu0 0
    %689 = vmatpush1.bf16.msra.mxu0 0
    %690 = vmatprep.subr.bf16.mxu0 0
    %691 = vmatpush1.bf16.msra.mxu0 0
    %692 = vmatprep.subr.bf16.mxu0 0
    %693 = vmatpush1.bf16.msra.mxu0 0
    %694 = vmatprep.subr.bf16.mxu0 0
    %695 = vmatpush1.bf16.msra.mxu0 0
    %696 = vmatprep.subr.bf16.mxu0 0
    %697 = vmatpush1.bf16.msra.mxu0 0
    %698 = vmatprep.subr.bf16.mxu0 0
    %699 = vmatpush1.bf16.msra.mxu0 0
    %700 = vmatprep.subr.bf16.mxu0 0
    %701 = vmatpush1.bf16.msra.mxu0 0
    %702 = vmatprep.subr.bf16.mxu0 0
    %703 = vmatpush1.bf16.msra.mxu0 0
    %704 = vmatprep.subr.bf16.mxu0 0
    %705 = vmatpush1.bf16.msra.mxu0 0
    %706 = vmatprep.subr.bf16.mxu0 0
    %707 = vmatpush1.bf16.msra.mxu0 0
    %708 = vmatprep.mubr.bf16.mxu0 0
    %709 = vmatmul.mubr.bf16.gmra.mrb[0].mxu0 %v671
    %v710 = vpop.f32.mrb[0].mxu0
    %v711 = vadd.f32 0.0, %v710
    %v712 = vpop.f32.mrb[0].mxu0
    %v713 = vpop.f32.mrb[0].mxu0
    %v714 = vpop.f32.mrb[0].mxu0
    %715 = vdwg.mxu0
    %716 = vrot.lane.b32.xlu0 %v606, 120
    %v717 = vpop.permute.xlu0 %716
    %718 = vrot.lane.b32.xlu0 %v606, 88
    %v719 = vpop.permute.xlu0 %718
    %v721 = vsel %vm147, %v717, 0
    %v724 = vsel %vm147, %v719, 0
    %726 = vmatprep.subr.bf16.mxu0 0
    %727 = vmatpush1.bf16.xpose.msra.mxu0 %v724
    %728 = vmatprep.subr.bf16.mxu0 0
    %729 = vmatpush1.bf16.xpose.msra.mxu0 0
    %730 = vmatprep.subr.bf16.mxu0 0
    %731 = vmatpush1.bf16.xpose.msra.mxu0 0
    %732 = vmatprep.subr.bf16.mxu0 0
    %733 = vmatpush1.bf16.xpose.msra.mxu0 0
    %734 = vmatprep.subr.bf16.mxu0 0
    %735 = vmatpush1.bf16.xpose.msra.mxu0 0
    %736 = vmatprep.subr.bf16.mxu0 0
    %737 = vmatpush1.bf16.xpose.msra.mxu0 0
    %738 = vmatprep.subr.bf16.mxu0 0
    %739 = vmatpush1.bf16.xpose.msra.mxu0 0
    %740 = vmatprep.subr.bf16.mxu0 0
    %741 = vmatpush1.bf16.xpose.msra.mxu0 0
    %742 = vmatprep.subr.bf16.mxu0 0
    %743 = vmatpush1.bf16.xpose.msra.mxu0 0
    %744 = vmatprep.subr.bf16.mxu0 0
    %745 = vmatpush1.bf16.xpose.msra.mxu0 0
    %746 = vmatprep.subr.bf16.mxu0 0
    %747 = vmatpush1.bf16.xpose.msra.mxu0 0
    %748 = vmatprep.subr.bf16.mxu0 0
    %749 = vmatpush1.bf16.xpose.msra.mxu0 0
    %750 = vmatprep.subr.bf16.mxu0 0
    %751 = vmatpush1.bf16.xpose.msra.mxu0 0
    %752 = vmatprep.subr.bf16.mxu0 0
    %753 = vmatpush1.bf16.xpose.msra.mxu0 0
    %754 = vmatprep.subr.bf16.mxu0 0
    %755 = vmatpush1.bf16.xpose.msra.mxu0 0
    %756 = vmatprep.subr.bf16.mxu0 0
    %757 = vmatpush1.bf16.xpose.msra.mxu0 0
    %758 = vmatprep.mubr.bf16.mxu0 0
    %759 = vmatmul.mubr.bf16.gmra.mrb[0].mxu0 %v721
    %v760 = vpop.f32.mrb[0].mxu0
    %v761 = vadd.f32 0.0, %v760
    %v762 = vpop.f32.mrb[0].mxu0
    %v763 = vpop.f32.mrb[0].mxu0
    %v764 = vpop.f32.mrb[0].mxu0
    %765 = vdwg.mxu0
    %v766 = vsel %vm143, %v761, -1e+30
    %v767 = vsel %vm147, %v766, -inf
    %768 = vmax.xlane.f32.xlu0 %v767
    %v769 = vpop.xlane.xlu0 %768
    %v770 = vsub.f32 %v766, %v769
    %v771 = vmul.f32 %v770, 1.442695
    %v772 = vpow.pop %v771
    %v773 = vsel %vm147, %v772, 0.0
    %774 = vadd.xlane.f32.xlu0 %v773
    %v775 = vpop.xlane.xlu0 %774
    %v776 = vrcp.pop %v775
    %v777 = vmul.f32 %v772, %v776
    %v778 = vpack.c.bf16 %v777, %v777
    %779 = vrot.lane.b32.xlu0 %v606, 56
    %v780 = vpop.permute.xlu0 %779
    %v782 = vsel %vm147, %v778, 0
    %v785 = vsel %vm212, %v780, 0
    %787 = vmatprep.subr.bf16.mxu0 0
    %788 = vmatpush1.bf16.msra.mxu0 %v785
    %789 = vmatprep.subr.bf16.mxu0 0
    %790 = vmatpush1.bf16.msra.mxu0 0
    %791 = vmatprep.subr.bf16.mxu0 0
    %792 = vmatpush1.bf16.msra.mxu0 0
    %793 = vmatprep.subr.bf16.mxu0 0
    %794 = vmatpush1.bf16.msra.mxu0 0
    %795 = vmatprep.subr.bf16.mxu0 0
    %796 = vmatpush1.bf16.msra.mxu0 0
    %797 = vmatprep.subr.bf16.mxu0 0
    %798 = vmatpush1.bf16.msra.mxu0 0
    %799 = vmatprep.subr.bf16.mxu0 0
    %800 = vmatpush1.bf16.msra.mxu0 0
    %801 = vmatprep.subr.bf16.mxu0 0
    %802 = vmatpush1.bf16.msra.mxu0 0
    %803 = vmatprep.subr.bf16.mxu0 0
    %804 = vmatpush1.bf16.msra.mxu0 0
    %805 = vmatprep.subr.bf16.mxu0 0
    %806 = vmatpush1.bf16.msra.mxu0 0
    %807 = vmatprep.subr.bf16.mxu0 0
    %808 = vmatpush1.bf16.msra.mxu0 0
    %809 = vmatprep.subr.bf16.mxu0 0
    %810 = vmatpush1.bf16.msra.mxu0 0
    %811 = vmatprep.subr.bf16.mxu0 0
    %812 = vmatpush1.bf16.msra.mxu0 0
    %813 = vmatprep.subr.bf16.mxu0 0
    %814 = vmatpush1.bf16.msra.mxu0 0
    %815 = vmatprep.subr.bf16.mxu0 0
    %816 = vmatpush1.bf16.msra.mxu0 0
    %817 = vmatprep.subr.bf16.mxu0 0
    %818 = vmatpush1.bf16.msra.mxu0 0
    %819 = vmatprep.mubr.bf16.mxu0 0
    %820 = vmatmul.mubr.bf16.gmra.mrb[0].mxu0 %v782
    %v821 = vpop.f32.mrb[0].mxu0
    %v822 = vadd.f32 0.0, %v821
    %v823 = vpop.f32.mrb[0].mxu0
    %v824 = vpop.f32.mrb[0].mxu0
    %v825 = vpop.f32.mrb[0].mxu0
    %826 = vdwg.mxu0
    %827 = vrot.lane.b32.xlu0 %v606, 112
    %v828 = vpop.permute.xlu0 %827
    %829 = vrot.lane.b32.xlu0 %v606, 80
    %v830 = vpop.permute.xlu0 %829
    %v832 = vsel %vm147, %v828, 0
    %v835 = vsel %vm147, %v830, 0
    %837 = vmatprep.subr.bf16.mxu0 0
    %838 = vmatpush1.bf16.xpose.msra.mxu0 %v835
    %839 = vmatprep.subr.bf16.mxu0 0
    %840 = vmatpush1.bf16.xpose.msra.mxu0 0
    %841 = vmatprep.subr.bf16.mxu0 0
    %842 = vmatpush1.bf16.xpose.msra.mxu0 0
    %843 = vmatprep.subr.bf16.mxu0 0
    %844 = vmatpush1.bf16.xpose.msra.mxu0 0
    %845 = vmatprep.subr.bf16.mxu0 0
    %846 = vmatpush1.bf16.xpose.msra.mxu0 0
    %847 = vmatprep.subr.bf16.mxu0 0
    %848 = vmatpush1.bf16.xpose.msra.mxu0 0
    %849 = vmatprep.subr.bf16.mxu0 0
    %850 = vmatpush1.bf16.xpose.msra.mxu0 0
    %851 = vmatprep.subr.bf16.mxu0 0
    %852 = vmatpush1.bf16.xpose.msra.mxu0 0
    %853 = vmatprep.subr.bf16.mxu0 0
    %854 = vmatpush1.bf16.xpose.msra.mxu0 0
    %855 = vmatprep.subr.bf16.mxu0 0
    %856 = vmatpush1.bf16.xpose.msra.mxu0 0
    %857 = vmatprep.subr.bf16.mxu0 0
    %858 = vmatpush1.bf16.xpose.msra.mxu0 0
    %859 = vmatprep.subr.bf16.mxu0 0
    %860 = vmatpush1.bf16.xpose.msra.mxu0 0
    %861 = vmatprep.subr.bf16.mxu0 0
    %862 = vmatpush1.bf16.xpose.msra.mxu0 0
    %863 = vmatprep.subr.bf16.mxu0 0
    %864 = vmatpush1.bf16.xpose.msra.mxu0 0
    %865 = vmatprep.subr.bf16.mxu0 0
    %866 = vmatpush1.bf16.xpose.msra.mxu0 0
    %867 = vmatprep.subr.bf16.mxu0 0
    %868 = vmatpush1.bf16.xpose.msra.mxu0 0
    %869 = vmatprep.mubr.bf16.mxu0 0
    %870 = vmatmul.mubr.bf16.gmra.mrb[0].mxu0 %v832
    %v871 = vpop.f32.mrb[0].mxu0
    %v872 = vadd.f32 0.0, %v871
    %v873 = vpop.f32.mrb[0].mxu0
    %v874 = vpop.f32.mrb[0].mxu0
    %v875 = vpop.f32.mrb[0].mxu0
    %876 = vdwg.mxu0
    %v877 = vsel %vm143, %v872, -1e+30
    %v878 = vsel %vm147, %v877, -inf
    %879 = vmax.xlane.f32.xlu0 %v878
    %v880 = vpop.xlane.xlu0 %879
    %v881 = vsub.f32 %v877, %v880
    %v882 = vmul.f32 %v881, 1.442695
    %v883 = vpow.pop %v882
    %v884 = vsel %vm147, %v883, 0.0
    %885 = vadd.xlane.f32.xlu0 %v884
    %v886 = vpop.xlane.xlu0 %885
    %v887 = vrcp.pop %v886
    %v888 = vmul.f32 %v883, %v887
    %v889 = vpack.c.bf16 %v888, %v888
    %890 = vrot.lane.b32.xlu0 %v606, 48
    %v891 = vpop.permute.xlu0 %890
    %v893 = vsel %vm147, %v889, 0
    %v896 = vsel %vm212, %v891, 0
    %898 = vmatprep.subr.bf16.mxu0 0
    %899 = vmatpush1.bf16.msra.mxu0 %v896
    %900 = vmatprep.subr.bf16.mxu0 0
    %901 = vmatpush1.bf16.msra.mxu0 0
    %902 = vmatprep.subr.bf16.mxu0 0
    %903 = vmatpush1.bf16.msra.mxu0 0
    %904 = vmatprep.subr.bf16.mxu0 0
    %905 = vmatpush1.bf16.msra.mxu0 0
    %906 = vmatprep.subr.bf16.mxu0 0
    %907 = vmatpush1.bf16.msra.mxu0 0
    %908 = vmatprep.subr.bf16.mxu0 0
    %909 = vmatpush1.bf16.msra.mxu0 0
    %910 = vmatprep.subr.bf16.mxu0 0
    %911 = vmatpush1.bf16.msra.mxu0 0
    %912 = vmatprep.subr.bf16.mxu0 0
    %913 = vmatpush1.bf16.msra.mxu0 0
    %914 = vmatprep.subr.bf16.mxu0 0
    %915 = vmatpush1.bf16.msra.mxu0 0
    %916 = vmatprep.subr.bf16.mxu0 0
    %917 = vmatpush1.bf16.msra.mxu0 0
    %918 = vmatprep.subr.bf16.mxu0 0
    %919 = vmatpush1.bf16.msra.mxu0 0
    %920 = vmatprep.subr.bf16.mxu0 0
    %921 = vmatpush1.bf16.msra.mxu0 0
    %922 = vmatprep.subr.bf16.mxu0 0
    %923 = vmatpush1.bf16.msra.mxu0 0
    %924 = vmatprep.subr.bf16.mxu0 0
    %925 = vmatpush1.bf16.msra.mxu0 0
    %926 = vmatprep.subr.bf16.mxu0 0
    %927 = vmatpush1.bf16.msra.mxu0 0
    %928 = vmatprep.subr.bf16.mxu0 0
    %929 = vmatpush1.bf16.msra.mxu0 0
    %930 = vmatprep.mubr.bf16.mxu0 0
    %931 = vmatmul.mubr.bf16.gmra.mrb[0].mxu0 %v893
    %v932 = vpop.f32.mrb[0].mxu0
    %v933 = vadd.f32 0.0, %v932
    %v934 = vpop.f32.mrb[0].mxu0
    %v935 = vpop.f32.mrb[0].mxu0
    %v936 = vpop.f32.mrb[0].mxu0
    %937 = vdwg.mxu0
    %938 = vrot.lane.b32.xlu0 %v606, 104
    %v939 = vpop.permute.xlu0 %938
    %940 = vrot.lane.b32.xlu0 %v606, 72
    %v941 = vpop.permute.xlu0 %940
    %v943 = vsel %vm147, %v939, 0
    %v946 = vsel %vm147, %v941, 0
    %948 = vmatprep.subr.bf16.mxu0 0
    %949 = vmatpush1.bf16.xpose.msra.mxu0 %v946
    %950 = vmatprep.subr.bf16.mxu0 0
    %951 = vmatpush1.bf16.xpose.msra.mxu0 0
    %952 = vmatprep.subr.bf16.mxu0 0
    %953 = vmatpush1.bf16.xpose.msra.mxu0 0
    %954 = vmatprep.subr.bf16.mxu0 0
    %955 = vmatpush1.bf16.xpose.msra.mxu0 0
    %956 = vmatprep.subr.bf16.mxu0 0
    %957 = vmatpush1.bf16.xpose.msra.mxu0 0
    %958 = vmatprep.subr.bf16.mxu0 0
    %959 = vmatpush1.bf16.xpose.msra.mxu0 0
    %960 = vmatprep.subr.bf16.mxu0 0
    %961 = vmatpush1.bf16.xpose.msra.mxu0 0
    %962 = vmatprep.subr.bf16.mxu0 0
    %963 = vmatpush1.bf16.xpose.msra.mxu0 0
    %964 = vmatprep.subr.bf16.mxu0 0
    %965 = vmatpush1.bf16.xpose.msra.mxu0 0
    %966 = vmatprep.subr.bf16.mxu0 0
    %967 = vmatpush1.bf16.xpose.msra.mxu0 0
    %968 = vmatprep.subr.bf16.mxu0 0
    %969 = vmatpush1.bf16.xpose.msra.mxu0 0
    %970 = vmatprep.subr.bf16.mxu0 0
    %971 = vmatpush1.bf16.xpose.msra.mxu0 0
    %972 = vmatprep.subr.bf16.mxu0 0
    %973 = vmatpush1.bf16.xpose.msra.mxu0 0
    %974 = vmatprep.subr.bf16.mxu0 0
    %975 = vmatpush1.bf16.xpose.msra.mxu0 0
    %976 = vmatprep.subr.bf16.mxu0 0
    %977 = vmatpush1.bf16.xpose.msra.mxu0 0
    %978 = vmatprep.subr.bf16.mxu0 0
    %979 = vmatpush1.bf16.xpose.msra.mxu0 0
    %980 = vmatprep.mubr.bf16.mxu0 0
    %981 = vmatmul.mubr.bf16.gmra.mrb[0].mxu0 %v943
    %v982 = vpop.f32.mrb[0].mxu0
    %v983 = vadd.f32 0.0, %v982
    %v984 = vpop.f32.mrb[0].mxu0
    %v985 = vpop.f32.mrb[0].mxu0
    %v986 = vpop.f32.mrb[0].mxu0
    %987 = vdwg.mxu0
    %v988 = vsel %vm143, %v983, -1e+30
    %v989 = vsel %vm147, %v988, -inf
    %990 = vmax.xlane.f32.xlu0 %v989
    %v991 = vpop.xlane.xlu0 %990
    %v992 = vsub.f32 %v988, %v991
    %v993 = vmul.f32 %v992, 1.442695
    %v994 = vpow.pop %v993
    %v995 = vsel %vm147, %v994, 0.0
    %996 = vadd.xlane.f32.xlu0 %v995
    %v997 = vpop.xlane.xlu0 %996
    %v998 = vrcp.pop %v997
    %v999 = vmul.f32 %v994, %v998
    %v1000 = vpack.c.bf16 %v999, %v999
    %1001 = vrot.lane.b32.xlu0 %v606, 40
    %v1002 = vpop.permute.xlu0 %1001
    %v1004 = vsel %vm147, %v1000, 0
    %v1007 = vsel %vm212, %v1002, 0
    %1009 = vmatprep.subr.bf16.mxu0 0
    %1010 = vmatpush1.bf16.msra.mxu0 %v1007
    %1011 = vmatprep.subr.bf16.mxu0 0
    %1012 = vmatpush1.bf16.msra.mxu0 0
    %1013 = vmatprep.subr.bf16.mxu0 0
    %1014 = vmatpush1.bf16.msra.mxu0 0
    %1015 = vmatprep.subr.bf16.mxu0 0
    %1016 = vmatpush1.bf16.msra.mxu0 0
    %1017 = vmatprep.subr.bf16.mxu0 0
    %1018 = vmatpush1.bf16.msra.mxu0 0
    %1019 = vmatprep.subr.bf16.mxu0 0
    %1020 = vmatpush1.bf16.msra.mxu0 0
    %1021 = vmatprep.subr.bf16.mxu0 0
    %1022 = vmatpush1.bf16.msra.mxu0 0
    %1023 = vmatprep.subr.bf16.mxu0 0
    %1024 = vmatpush1.bf16.msra.mxu0 0
    %1025 = vmatprep.subr.bf16.mxu0 0
    %1026 = vmatpush1.bf16.msra.mxu0 0
    %1027 = vmatprep.subr.bf16.mxu0 0
    %1028 = vmatpush1.bf16.msra.mxu0 0
    %1029 = vmatprep.subr.bf16.mxu0 0
    %1030 = vmatpush1.bf16.msra.mxu0 0
    %1031 = vmatprep.subr.bf16.mxu0 0
    %1032 = vmatpush1.bf16.msra.mxu0 0
    %1033 = vmatprep.subr.bf16.mxu0 0
    %1034 = vmatpush1.bf16.msra.mxu0 0
    %1035 = vmatprep.subr.bf16.mxu0 0
    %1036 = vmatpush1.bf16.msra.mxu0 0
    %1037 = vmatprep.subr.bf16.mxu0 0
    %1038 = vmatpush1.bf16.msra.mxu0 0
    %1039 = vmatprep.subr.bf16.mxu0 0
    %1040 = vmatpush1.bf16.msra.mxu0 0
    %1041 = vmatprep.mubr.bf16.mxu0 0
    %1042 = vmatmul.mubr.bf16.gmra.mrb[0].mxu0 %v1004
    %v1043 = vpop.f32.mrb[0].mxu0
    %v1044 = vadd.f32 0.0, %v1043
    %v1045 = vpop.f32.mrb[0].mxu0
    %v1046 = vpop.f32.mrb[0].mxu0
    %v1047 = vpop.f32.mrb[0].mxu0
    %1048 = vdwg.mxu0
    %1050 = vrot.lane.b32.xlu0 %v822, 8
    %v1051 = vpop.permute.xlu0 %1050
    %1054 = vrot.lane.b32.xlu0 %v933, 16
    %v1055 = vpop.permute.xlu0 %1054
    %1058 = vrot.lane.b32.xlu0 %v1044, 24
    %v1059 = vpop.permute.xlu0 %1058
    %v1061 = vsel %vm147, %v711, %v1051
    %v1062 = vsel %vm602, %v1061, %v1055
    %v1063 = vsel %vm604, %v1062, %v1059
    %v1064 = vpack.c.bf16 %v1063, %v605
    %v1065 = vld [vmem:[#allocation7] sm:$0xf]
    %v1066 = vld [vmem:[#allocation7 + $0x4] sm:$0xf]
    %v1067 = vld [vmem:[#allocation7 + $0x8] sm:$0xf]
    %v1068 = vld [vmem:[#allocation7 + $0xc] sm:$0xf]
    %v1069 = vld [vmem:[%s4] sm:$0x1]
    %v1071 = vlaneseq
    %v1072 = vshrl.u32 %v1071, 7
    %v1073 = vsub.s32 0, %v1072
    %v1074 = vrot.slane %v1069, %v1073
    %v1080 = vunpack.c.l.b16 %v1065
    %v1081 = vunpack.c.l.b16 %v1066
    %v1082 = vunpack.c.l.b16 %v1067
    %v1083 = vunpack.c.l.b16 %v1068
    %v1084 = vpack.c.b16 %v1081, %v1080
    %v1085 = vpack.c.b16 %v1083, %v1082
    %v1089 = vsel %vm93, %v1064, 0
    %1091 = vmatprep.subr.bf16.mxu0 0
    %1092 = vmatpush1.bf16.msra.mxu0 %v1084
    %1093 = vmatprep.subr.bf16.mxu0 0
    %1094 = vmatpush1.bf16.msra.mxu0 %v1085
    %1095 = vmatprep.subr.bf16.mxu0 0
    %1096 = vmatpush1.bf16.msra.mxu0 0
    %1097 = vmatprep.subr.bf16.mxu0 0
    %1098 = vmatpush1.bf16.msra.mxu0 0
    %1099 = vmatprep.subr.bf16.mxu0 0
    %1100 = vmatpush1.bf16.msra.mxu0 0
    %1101 = vmatprep.subr.bf16.mxu0 0
    %1102 = vmatpush1.bf16.msra.mxu0 0
    %1103 = vmatprep.subr.bf16.mxu0 0
    %1104 = vmatpush1.bf16.msra.mxu0 0
    %1105 = vmatprep.subr.bf16.mxu0 0
    %1106 = vmatpush1.bf16.msra.mxu0 0
    %1107 = vmatprep.subr.bf16.mxu0 0
    %1108 = vmatpush1.bf16.msra.mxu0 0
    %1109 = vmatprep.subr.bf16.mxu0 0
    %1110 = vmatpush1.bf16.msra.mxu0 0
    %1111 = vmatprep.subr.bf16.mxu0 0
    %1112 = vmatpush1.bf16.msra.mxu0 0
    %1113 = vmatprep.subr.bf16.mxu0 0
    %1114 = vmatpush1.bf16.msra.mxu0 0
    %1115 = vmatprep.subr.bf16.mxu0 0
    %1116 = vmatpush1.bf16.msra.mxu0 0
    %1117 = vmatprep.subr.bf16.mxu0 0
    %1118 = vmatpush1.bf16.msra.mxu0 0
    %1119 = vmatprep.subr.bf16.mxu0 0
    %1120 = vmatpush1.bf16.msra.mxu0 0
    %1121 = vmatprep.subr.bf16.mxu0 0
    %1122 = vmatpush1.bf16.msra.mxu0 0
    %1123 = vmatprep.mubr.bf16.mxu0 0
    %1124 = vmatmul.mubr.bf16.gmra.mrb[0].mxu0 %v1089
    %v1125 = vpop.f32.mrb[0].mxu0
    %v1126 = vadd.f32 %v1074, %v1125
    %v1127 = vpop.f32.mrb[0].mxu0
    %v1128 = vpop.f32.mrb[0].mxu0
    %v1129 = vadd.f32 %v1074, %v1128
    %v1130 = vpop.f32.mrb[0].mxu0
    %1131 = vdwg.mxu0
    %1132 = vst.msk [vmem:[#allocation8] sm:$0xff] %vm93, %v1126
    %1133 = vst.msk [vmem:[#allocation8 + $0x8] sm:$0xff] %vm93, %v1129
    // Predicated region
    $region34: #{tpu_custom_call.1} parent=1 // pred_check
      _
    $region35: #{tpu_custom_call.1} parent=1 // pred_check_branch
      %1135 = sbr.rel (0) target = $region37
    $region36: #{tpu_custom_call.1} parent=1 // pred_region
      %s1137 = ssub.s32 256, 256
      %1138 = vsyncadd [#allocation4], %s1137
      %s1139 = sshll.u32 [#allocation8], 4
      %s1140 = int_to_ptr.vmem [resolvable:$true] %s1139
      %1145 = dma.vmem_to_hbm [thread:$0]  %s1140, 256, %s5, [#allocation4], 128, 128, 8
    $region37: #{tpu_custom_call.1} parent=1 // pred_fallthru
      _
    // Predicated region
    $region38: #{tpu_custom_call.1} parent=1 // pred_check
      _
    $region39: #{tpu_custom_call.1} parent=1 // pred_check_branch
      %1147 = sbr.rel (0) target = $region41
    $region40: #{tpu_custom_call.1} parent=1 // pred_region
      %1148 = dma.done [#allocation4], 256
    $region41: #{tpu_custom_call.1} parent=1 // pred_fallthru
      _
    %1149 = vsyncpa [#allocation3], 1
    %1150 = vsyncpa [#allocation6], 1
    %1151 = vsyncpa [#allocation4], 1

</llo_original>
